<compile_context>
chip_gen: v7x
topology: tpu7x:2x2x1
jax: 0.10.0
libtpu: 0.0.40
codegen_flags: <defaults>
</compile_context>

<pallas_src>
import functools

import jax
import jax.numpy as jnp
from jax import lax
from jax.experimental import pallas as pl
from jax.experimental.pallas import tpu as pltpu


# ----------------------------------------------------------------------------
# helpers
# ----------------------------------------------------------------------------
def _rup(n, m):
    return ((n + m - 1) // m) * m


def _pad_to(a, shape):
    return jnp.pad(a, [(0, t - s) for s, t in zip(a.shape, shape)])


def _row_tile(Tp, Bp, target):
    """Row tile (multiple of Bp) that divides Tp*Bp exactly, ~<= target."""
    steps = max(1, min(Tp, target // Bp))
    while Tp % steps:
        steps -= 1
    return Bp * steps


def _nbytes(shape, dtype):
    n = 1
    for s in shape:
        n *= int(s)
    return n * jnp.dtype(dtype).itemsize


def _vmem_limit(block_list, scratch_bytes=0):
    total = sum(_nbytes(s, d) for s, d in block_list)
    total = 2 * total + scratch_bytes + (2 << 20)   # double-buffer + headroom
    return int(min(max(total, 16 << 20), 64 << 20))


# ----------------------------------------------------------------------------
# Stage 1 kernel: extract MLP (Lin+ReLU, Lin+ReLU, Lin), length mask, and the
# RNN input projection iproj = relu(skip) @ w_ih + (b_ih + b_hh) fused in.
# ----------------------------------------------------------------------------
def _extract_iproj_kernel(x_ref, m_ref, w1_ref, b1_ref, w2_ref, b2_ref,
                          w3_ref, b3_ref, wih_ref, bsum_ref,
                          skip_ref, iproj_ref):
    w1 = w1_ref[...]
    w2 = w2_ref[...]
    w3 = w3_ref[...]
    wih = wih_ref[...]
    x = x_ref[...].astype(w1.dtype)
    h1 = jnp.maximum(
        jnp.dot(x, w1, preferred_element_type=jnp.float32) + b1_ref[...], 0.0)
    h2 = jnp.maximum(
        jnp.dot(h1.astype(w2.dtype), w2,
                preferred_element_type=jnp.float32) + b2_ref[...], 0.0)
    skip = (jnp.dot(h2.astype(w3.dtype), w3,
                    preferred_element_type=jnp.float32)
            + b3_ref[...]) * m_ref[...]              # fused length mask
    skip_ref[...] = skip
    r = jnp.maximum(skip, 0.0).astype(wih.dtype)
    iproj_ref[...] = (jnp.dot(r, wih, preferred_element_type=jnp.float32)
                      + bsum_ref[...])


# ----------------------------------------------------------------------------
# Stage 2 kernel: the serial recurrence h_t = tanh(iproj_t + h_{t-1} @ w_hh),
# tiled over T, h carried across grid steps in VMEM scratch.
# ----------------------------------------------------------------------------
def _rnn_recurrence_kernel(iproj_ref, whh_ref, h_ref, h_carry):
    @pl.when(pl.program_id(1) == 0)
    def _init():
        h_carry[...] = jnp.zeros_like(h_carry)

    Tc = iproj_ref.shape[0]

    def step(t, h_prev):
        w = whh_ref[...]                      # loaded per step: no (Hp,Hp)
        rec = jnp.dot(h_prev.astype(w.dtype), w,   # value live across unroll
                      preferred_element_type=jnp.float32)
        h_new = jnp.tanh(iproj_ref[t] + rec)
        h_ref[t] = h_new
        return h_new

    h_carry[...] = lax.fori_loop(0, Tc, step, h_carry[...], unroll=True)


# ----------------------------------------------------------------------------
# Stage 3 kernel: out MLP (ReLU of h, Lin+ReLU, Lin+ReLU, Lin) + length mask.
# ----------------------------------------------------------------------------
def _out_net_kernel(h_ref, m_ref, w1_ref, b1_ref, w2_ref, b2_ref,
                    w3_ref, b3_ref, y_ref):
    w1 = w1_ref[...]
    w2 = w2_ref[...]
    w3 = w3_ref[...]
    o = jnp.maximum(h_ref[...], 0.0).astype(w1.dtype)
    u1 = jnp.maximum(
        jnp.dot(o, w1, preferred_element_type=jnp.float32) + b1_ref[...], 0.0)
    u2 = jnp.maximum(
        jnp.dot(u1.astype(w2.dtype), w2,
                preferred_element_type=jnp.float32) + b2_ref[...], 0.0)
    y_ref[...] = (jnp.dot(u2.astype(w3.dtype), w3,
                          preferred_element_type=jnp.float32)
                  + b3_ref[...]) * m_ref[...]        # fused length mask


# ----------------------------------------------------------------------------
# Wrapper
# ----------------------------------------------------------------------------
def my_rnn_skip_nocat(params, x, x_len, *, gemm_dtype=jnp.float32,
                      mlp_tile_rows=512, t_chunk=8):
    """x: (B, T, input_size) f32, x_len: (B,) int32. Returns (ys, x_skips)."""
    B, T, Fin = x.shape
    H = params["w_ih"].shape[0]
    Out = params["wo_out"].shape[1]
    f32 = jnp.float32
    gd = gemm_dtype

    LANE, SUB = 128, 8
    Hp = _rup(H, LANE)
    Op = _rup(Out, LANE)
    Bp = _rup(B, SUB)
    Tc = int(t_chunk)
    Tp = _rup(T, Tc)
    M = Tp * Bp
    tm = _row_tile(Tp, Bp, mlp_tile_rows)

    # --- zero-pad parameters to lane-dense shapes (exactness preserved) -----
    def wpad(w, shape):
        return _pad_to(w.astype(f32), shape).astype(gd)

    def bpad(b, shape):
        return _pad_to(b.astype(f32), shape)

    we_in = wpad(params["we_in"], (Fin, Hp)); be_in = bpad(params["be_in"], (1, Hp))
    we_h = wpad(params["we_h"], (Hp, Hp));    be_h = bpad(params["be_h"], (1, Hp))
    we_out = wpad(params["we_out"], (Hp, Hp)); be_out = bpad(params["be_out"], (1, Hp))
    w_ih = wpad(params["w_ih"], (Hp, Hp))
    w_hh = wpad(params["w_hh"], (Hp, Hp))
    b_sum = bpad(params["b_ih"] + params["b_hh"], (1, Hp))
    wo_in = wpad(params["wo_in"], (Hp, Hp));  bo_in = bpad(params["bo_in"], (1, Hp))
    wo_h = wpad(params["wo_h"], (Hp, Hp));    bo_h = bpad(params["bo_h"], (1, Hp))
    wo_out = wpad(params["wo_out"], (Hp, Op)); bo_out = bpad(params["bo_out"], (1, Op))

    # --- T-major input layout: only the narrow Fin axis gets transposed -----
    xp = jnp.pad(x.astype(f32), ((0, Bp - B), (0, Tp - T), (0, 0)))   # (Bp,Tp,Fin)
    x_tbf = jnp.transpose(xp, (1, 0, 2)).reshape(M, Fin)              # (M, Fin)

    lens = jnp.pad(x_len.astype(jnp.int32), (0, Bp - B))              # pad rows: len 0
    mask = (jnp.arange(Tp, dtype=jnp.int32)[:, None] < lens[None, :]).astype(f32)
    mask2d = mask.reshape(M, 1)                                        # (M, 1)

    # --- Stage 1: extract net + RNN input projection, one parallel GEMM pass
    s1_blocks = [((tm, Fin), f32), ((tm, 1), f32),
                 (we_in.shape, gd), (be_in.shape, f32),
                 (we_h.shape, gd), (be_h.shape, f32),
                 (we_out.shape, gd), (be_out.shape, f32),
                 (w_ih.shape, gd), (b_sum.shape, f32),
                 ((tm, Hp), f32), ((tm, Hp), f32)]
    skip_flat, iproj_flat = pl.pallas_call(
        _extract_iproj_kernel,
        out_shape=(jax.ShapeDtypeStruct((M, Hp), f32),
                   jax.ShapeDtypeStruct((M, Hp), f32)),
        grid=(M // tm,),
        in_specs=[
            pl.BlockSpec((tm, Fin), lambda i: (i, 0)),
            pl.BlockSpec((tm, 1), lambda i: (i, 0)),
            pl.BlockSpec(we_in.shape, lambda i: (0, 0)),
            pl.BlockSpec(be_in.shape, lambda i: (0, 0)),
            pl.BlockSpec(we_h.shape, lambda i: (0, 0)),
            pl.BlockSpec(be_h.shape, lambda i: (0, 0)),
            pl.BlockSpec(we_out.shape, lambda i: (0, 0)),
            pl.BlockSpec(be_out.shape, lambda i: (0, 0)),
            pl.BlockSpec(w_ih.shape, lambda i: (0, 0)),
            pl.BlockSpec(b_sum.shape, lambda i: (0, 0)),
        ],
        out_specs=(pl.BlockSpec((tm, Hp), lambda i: (i, 0)),
                   pl.BlockSpec((tm, Hp), lambda i: (i, 0))),
        compiler_params=pltpu.CompilerParams(
            dimension_semantics=("parallel",),
            vmem_limit_bytes=_vmem_limit(s1_blocks)),
    )(x_tbf, mask2d, we_in, be_in, we_h, be_h, we_out, be_out, w_ih, b_sum)

    # --- Stage 2: serial recurrence only, tiled over T, h carried in VMEM ---
    iproj_tbh = iproj_flat.reshape(Tp, Bp, Hp)      # free reshape (T-major)
    nb = 2 if (Bp % 16 == 0) else 1                 # batch halves -> 2 TCs on v7x
    Bb = Bp // nb
    nt = Tp // Tc
    s2_blocks = [((Tc, Bb, Hp), f32), (w_hh.shape, gd), ((Tc, Bb, Hp), f32)]
    h_seq = pl.pallas_call(
        _rnn_recurrence_kernel,
        out_shape=jax.ShapeDtypeStruct((Tp, Bp, Hp), f32),
        grid=(nb, nt),
        in_specs=[
            pl.BlockSpec((Tc, Bb, Hp), lambda b, t: (t, b, 0)),
            pl.BlockSpec(w_hh.shape, lambda b, t: (0, 0)),
        ],
        out_specs=pl.BlockSpec((Tc, Bb, Hp), lambda b, t: (t, b, 0)),
        scratch_shapes=[pltpu.VMEM((Bb, Hp), f32)],
        compiler_params=pltpu.CompilerParams(
            dimension_semantics=("parallel", "arbitrary"),
            vmem_limit_bytes=_vmem_limit(s2_blocks,
                                         scratch_bytes=_nbytes((Bb, Hp), f32))),
    )(iproj_tbh, w_hh)

    # --- Stage 3: out net, one parallel GEMM pass (no Hp-wide transpose) ----
    h_flat = h_seq.reshape(M, Hp)                   # free reshape (T-major)
    s3_blocks = [((tm, Hp), f32), ((tm, 1), f32),
                 (wo_in.shape, gd), (bo_in.shape, f32),
                 (wo_h.shape, gd), (bo_h.shape, f32),
                 (wo_out.shape, gd), (bo_out.shape, f32),
                 ((tm, Op), f32)]
    y_flat = pl.pallas_call(
        _out_net_kernel,
        out_shape=jax.ShapeDtypeStruct((M, Op), f32),
        grid=(M // tm,),
        in_specs=[
            pl.BlockSpec((tm, Hp), lambda i: (i, 0)),
            pl.BlockSpec((tm, 1), lambda i: (i, 0)),
            pl.BlockSpec(wo_in.shape, lambda i: (0, 0)),
            pl.BlockSpec(bo_in.shape, lambda i: (0, 0)),
            pl.BlockSpec(wo_h.shape, lambda i: (0, 0)),
            pl.BlockSpec(bo_h.shape, lambda i: (0, 0)),
            pl.BlockSpec(wo_out.shape, lambda i: (0, 0)),
            pl.BlockSpec(bo_out.shape, lambda i: (0, 0)),
        ],
        out_specs=pl.BlockSpec((tm, Op), lambda i: (i, 0)),
        compiler_params=pltpu.CompilerParams(
            dimension_semantics=("parallel",),
            vmem_limit_bytes=_vmem_limit(s3_blocks)),
    )(h_flat, mask2d, wo_in, bo_in, wo_h, bo_h, wo_out, bo_out)

    # --- strip padding; reorder only the narrow Out/H-wide outputs ----------
    ys = jnp.transpose(y_flat.reshape(Tp, Bp, Op)[:T, :B, :Out], (1, 0, 2))
    x_skips = jnp.transpose(skip_flat.reshape(Tp, Bp, Hp)[:T, :B, :H], (1, 0, 2))
    return ys, x_skips


# ----------------------------------------------------------------------------
# Pure-JAX reference of the PyTorch forward (inference path)
# ----------------------------------------------------------------------------
def reference(params, x, x_len):
    B, T, _ = x.shape
    H = params["w_ih"].shape[0]
    h = jnp.zeros((B, H), jnp.float32)
    ys, skips = [], []
    for t in range(T):
        xt = x[:, t, :]
        e = jax.nn.relu(xt @ params["we_in"] + params["be_in"])
        e = jax.nn.relu(e @ params["we_h"] + params["be_h"])
        skip = e @ params["we_out"] + params["be_out"]
        r = jax.nn.relu(skip)
        h = jnp.tanh(r @ params["w_ih"] + params["b_ih"]
                     + h @ params["w_hh"] + params["b_hh"])
        o = jax.nn.relu(h)
        u = jax.nn.relu(o @ params["wo_in"] + params["bo_in"])
        u = jax.nn.relu(u @ params["wo_h"] + params["bo_h"])
        y = u @ params["wo_out"] + params["bo_out"]
        m = (x_len > t)[:, None]
        ys.append(jnp.where(m, y, 0.0))
        skips.append(jnp.where(m, skip, 0.0))
    return jnp.stack(ys, axis=1), jnp.stack(skips, axis=1)


def init_params(key, input_size, hidden_size, output_size):
    ks = jax.random.split(key, 16)

    def w(k, shape):
        return jax.random.normal(k, shape, jnp.float32) * 0.1

    return {
        # extract NeuralNet (extract_layer=1)
        "we_in":  w(ks[0], (input_size, hidden_size)),
        "be_in":  w(ks[1], (1, hidden_size)),
        "we_h":   w(ks[2], (hidden_size, hidden_size)),
        "be_h":   w(ks[3], (1, hidden_size)),
        "we_out": w(ks[4], (hidden_size, hidden_size)),
        "be_out": w(ks[5], (1, hidden_size)),
        # nn.RNN (rnn_layer=1, tanh)
        "w_ih":   w(ks[6], (hidden_size, hidden_size)),
        "b_ih":   w(ks[7], (1, hidden_size)),
        "w_hh":   w(ks[8], (hidden_size, hidden_size)),
        "b_hh":   w(ks[9], (1, hidden_size)),
        # out NeuralNet (output_layer=1)
        "wo_in":  w(ks[10], (hidden_size, hidden_size)),
        "bo_in":  w(ks[11], (1, hidden_size)),
        "wo_h":   w(ks[12], (hidden_size, hidden_size)),
        "bo_h":   w(ks[13], (1, hidden_size)),
        "wo_out": w(ks[14], (hidden_size, output_size)),
        "bo_out": w(ks[15], (1, output_size)),
    }


if __name__ == "__main__":
    B, T, INPUT, HIDDEN, OUT = 4, 8, 16, 32, 8

    key = jax.random.PRNGKey(0)
    kp, kx = jax.random.split(key)
    params = init_params(kp, INPUT, HIDDEN, OUT)
    x = jax.random.normal(kx, (B, T, INPUT), jnp.float32)
    # pack_padded_sequence default requires lengths sorted descending
    x_len = jnp.array([8, 6, 5, 3], jnp.int32)

    ys_ref, skips_ref = reference(params, x, x_len)

    # f32 path: exact check against the f32 reference
    fwd = jax.jit(my_rnn_skip_nocat)
    ys, x_skips = fwd(params, x, x_len)
    jax.block_until_ready((ys, x_skips))
    assert ys.shape == (B, T, OUT) and x_skips.shape == (B, T, HIDDEN)
    assert jnp.allclose(ys, ys_ref, atol=1e-5, rtol=1e-5)
    assert jnp.allclose(x_skips, skips_ref, atol=1e-5, rtol=1e-5)

    # bf16 MXU-operand path (v6e/v7x production mode): weights bf16, f32
    # accumulation / carry / tanh.  Loose tolerance vs the f32 reference.
    fwd_bf16 = jax.jit(functools.partial(my_rnn_skip_nocat,
                                         gemm_dtype=jnp.bfloat16))
    ys_b, skips_b = fwd_bf16(params, x, x_len)
    jax.block_until_ready((ys_b, skips_b))
    assert jnp.all(jnp.isfinite(ys_b)) and jnp.all(jnp.isfinite(skips_b))
    assert jnp.allclose(ys_b, ys_ref, atol=1e-1, rtol=1e-1)
    assert jnp.allclose(skips_b, skips_ref, atol=1e-1, rtol=1e-1)

    print("KERNEL_OK")
</pallas_src>

<mosaic_0001>
module attributes {stable_mosaic.version = 11 : i64} {
  func.func @_rnn_recurrence_kernel(%arg0: i32, %arg1: i32, %arg2: memref<8x8x128xf32, #tpu.memory_space<vmem>>, %arg3: memref<128x128xf32, #tpu.memory_space<vmem>>, %arg4: memref<8x8x128xf32, #tpu.memory_space<vmem>>, %arg5: memref<8x128xf32, #tpu.memory_space<vmem>>) attributes {dimension_semantics = [#tpu.dimension_semantics<parallel>, #tpu.dimension_semantics<arbitrary>], iteration_bounds = array<i64: 1, 1>, scalar_prefetch = 0 : i64, scratch_operands = 1 : i64, tpu.core_type = #tpu.core_type<tc>, window_params = [{transform_indices = @transform_0, window_bounds = array<i64: 8, 8, 128>}, {pipeline_mode = #tpu.pipeline_mode<synchronous>, transform_indices = @transform_1, window_bounds = array<i64: 128, 128>}, {transform_indices = @transform_2, window_bounds = array<i64: 8, 8, 128>}]} {
    %c0_i32 = arith.constant 0 : i32
    %0 = arith.cmpi eq, %arg1, %c0_i32 : i32
    %1 = arith.extui %0 : i1 to i32
    %c0_i32_0 = arith.constant 0 : i32
    %2 = arith.cmpi ne, %1, %c0_i32_0 : i32
    scf.if %2 {
      %cst_60 = arith.constant 0.000000e+00 : f32
      %93 = vector.broadcast %cst_60 : f32 to vector<8x128xf32>
      %c0_61 = arith.constant 0 : index
      %c0_62 = arith.constant 0 : index
      %94 = vector.load %arg5[%c0_61, %c0_62] : memref<8x128xf32, #tpu.memory_space<vmem>>, vector<8x128xf32>
      tpu.vector_store %arg5[%c0_61, %c0_62], %93 {strides = array<i32>} : memref<8x128xf32, #tpu.memory_space<vmem>>, vector<8x128xf32>,
    } else {
    }
    %c0 = arith.constant 0 : index
    %c0_1 = arith.constant 0 : index
    %3 = vector.load %arg5[%c0, %c0_1] : memref<8x128xf32, #tpu.memory_space<vmem>>, vector<8x128xf32>
    %c0_i32_2 = arith.constant 0 : i32
    %c0_3 = arith.constant 0 : index
    %c0_4 = arith.constant 0 : index
    %4 = vector.load %arg3[%c0_3, %c0_4] : memref<128x128xf32, #tpu.memory_space<vmem>>, vector<128x128xf32>
    %cst = arith.constant dense<0.000000e+00> : vector<8x128xf32>
    %5 = tpu.matmul %3, %4, %cst {dimension_numbers = #tpu.dot_dimension_numbers<[1], [0], [0], [1], [0, 0, 1, 1], [], []>} : vector<8x128xf32>, vector<128x128xf32>, vector<8x128xf32> -> vector<8x128xf32>
    %6 = arith.index_cast %c0_i32_2 : i32 to index
    %c0_5 = arith.constant 0 : index
    %c0_6 = arith.constant 0 : index
    %7 = vector.load %arg2[%6, %c0_5, %c0_6] : memref<8x8x128xf32, #tpu.memory_space<vmem>>, vector<1x8x128xf32>
    %8 = vector.shape_cast %7 : vector<1x8x128xf32> to vector<8x128xf32>
    %9 = arith.addf %8, %5 : vector<8x128xf32>
    %10 = math.tanh %9 : vector<8x128xf32>
    %11 = arith.index_cast %c0_i32_2 : i32 to index
    %c0_7 = arith.constant 0 : index
    %c0_8 = arith.constant 0 : index
    %12 = vector.load %arg4[%11, %c0_7, %c0_8] : memref<8x8x128xf32, #tpu.memory_space<vmem>>, vector<1x8x128xf32>
    %13 = vector.shape_cast %12 : vector<1x8x128xf32> to vector<8x128xf32>
    %14 = vector.shape_cast %10 : vector<8x128xf32> to vector<1x8x128xf32>
    tpu.vector_store %arg4[%11, %c0_7, %c0_8], %14 {strides = array<i32>} : memref<8x8x128xf32, #tpu.memory_space<vmem>>, vector<1x8x128xf32>,
    %c1_i32 = arith.constant 1 : i32
    %c0_9 = arith.constant 0 : index
    %c0_10 = arith.constant 0 : index
    %15 = vector.load %arg3[%c0_9, %c0_10] : memref<128x128xf32, #tpu.memory_space<vmem>>, vector<128x128xf32>
    %cst_11 = arith.constant dense<0.000000e+00> : vector<8x128xf32>
    %16 = tpu.matmul %10, %15, %cst_11 {dimension_numbers = #tpu.dot_dimension_numbers<[1], [0], [0], [1], [0, 0, 1, 1], [], []>} : vector<8x128xf32>, vector<128x128xf32>, vector<8x128xf32> -> vector<8x128xf32>
    %17 = arith.index_cast %c1_i32 : i32 to index
    %c0_12 = arith.constant 0 : index
    %c0_13 = arith.constant 0 : index
    %18 = vector.load %arg2[%17, %c0_12, %c0_13] : memref<8x8x128xf32, #tpu.memory_space<vmem>>, vector<1x8x128xf32>
    %19 = vector.shape_cast %18 : vector<1x8x128xf32> to vector<8x128xf32>
    %20 = arith.addf %19, %16 : vector<8x128xf32>
    %21 = math.tanh %20 : vector<8x128xf32>
    %22 = arith.index_cast %c1_i32 : i32 to index
    %c0_14 = arith.constant 0 : index
    %c0_15 = arith.constant 0 : index
    %23 = vector.load %arg4[%22, %c0_14, %c0_15] : memref<8x8x128xf32, #tpu.memory_space<vmem>>, vector<1x8x128xf32>
    %24 = vector.shape_cast %23 : vector<1x8x128xf32> to vector<8x128xf32>
    %25 = vector.shape_cast %21 : vector<8x128xf32> to vector<1x8x128xf32>
    tpu.vector_store %arg4[%22, %c0_14, %c0_15], %25 {strides = array<i32>} : memref<8x8x128xf32, #tpu.memory_space<vmem>>, vector<1x8x128xf32>,
    %c2_i32 = arith.constant 2 : i32
    %c0_16 = arith.constant 0 : index
    %c0_17 = arith.constant 0 : index
    %26 = vector.load %arg3[%c0_16, %c0_17] : memref<128x128xf32, #tpu.memory_space<vmem>>, vector<128x128xf32>
    %cst_18 = arith.constant dense<0.000000e+00> : vector<8x128xf32>
    %27 = tpu.matmul %21, %26, %cst_18 {dimension_numbers = #tpu.dot_dimension_numbers<[1], [0], [0], [1], [0, 0, 1, 1], [], []>} : vector<8x128xf32>, vector<128x128xf32>, vector<8x128xf32> -> vector<8x128xf32>
    %28 = arith.index_cast %c2_i32 : i32 to index
    %c0_19 = arith.constant 0 : index
    %c0_20 = arith.constant 0 : index
    %29 = vector.load %arg2[%28, %c0_19, %c0_20] : memref<8x8x128xf32, #tpu.memory_space<vmem>>, vector<1x8x128xf32>
    %30 = vector.shape_cast %29 : vector<1x8x128xf32> to vector<8x128xf32>
    %31 = arith.addf %30, %27 : vector<8x128xf32>
    %32 = math.tanh %31 : vector<8x128xf32>
    %33 = arith.index_cast %c2_i32 : i32 to index
    %c0_21 = arith.constant 0 : index
    %c0_22 = arith.constant 0 : index
    %34 = vector.load %arg4[%33, %c0_21, %c0_22] : memref<8x8x128xf32, #tpu.memory_space<vmem>>, vector<1x8x128xf32>
    %35 = vector.shape_cast %34 : vector<1x8x128xf32> to vector<8x128xf32>
    %36 = vector.shape_cast %32 : vector<8x128xf32> to vector<1x8x128xf32>
    tpu.vector_store %arg4[%33, %c0_21, %c0_22], %36 {strides = array<i32>} : memref<8x8x128xf32, #tpu.memory_space<vmem>>, vector<1x8x128xf32>,
    %c3_i32 = arith.constant 3 : i32
    %c0_23 = arith.constant 0 : index
    %c0_24 = arith.constant 0 : index
    %37 = vector.load %arg3[%c0_23, %c0_24] : memref<128x128xf32, #tpu.memory_space<vmem>>, vector<128x128xf32>
    %cst_25 = arith.constant dense<0.000000e+00> : vector<8x128xf32>
    %38 = tpu.matmul %32, %37, %cst_25 {dimension_numbers = #tpu.dot_dimension_numbers<[1], [0], [0], [1], [0, 0, 1, 1], [], []>} : vector<8x128xf32>, vector<128x128xf32>, vector<8x128xf32> -> vector<8x128xf32>
    %39 = arith.index_cast %c3_i32 : i32 to index
    %c0_26 = arith.constant 0 : index
    %c0_27 = arith.constant 0 : index
    %40 = vector.load %arg2[%39, %c0_26, %c0_27] : memref<8x8x128xf32, #tpu.memory_space<vmem>>, vector<1x8x128xf32>
    %41 = vector.shape_cast %40 : vector<1x8x128xf32> to vector<8x128xf32>
    %42 = arith.addf %41, %38 : vector<8x128xf32>
    %43 = math.tanh %42 : vector<8x128xf32>
    %44 = arith.index_cast %c3_i32 : i32 to index
    %c0_28 = arith.constant 0 : index
    %c0_29 = arith.constant 0 : index
    %45 = vector.load %arg4[%44, %c0_28, %c0_29] : memref<8x8x128xf32, #tpu.memory_space<vmem>>, vector<1x8x128xf32>
    %46 = vector.shape_cast %45 : vector<1x8x128xf32> to vector<8x128xf32>
    %47 = vector.shape_cast %43 : vector<8x128xf32> to vector<1x8x128xf32>
    tpu.vector_store %arg4[%44, %c0_28, %c0_29], %47 {strides = array<i32>} : memref<8x8x128xf32, #tpu.memory_space<vmem>>, vector<1x8x128xf32>,
    %c4_i32 = arith.constant 4 : i32
    %c0_30 = arith.constant 0 : index
    %c0_31 = arith.constant 0 : index
    %48 = vector.load %arg3[%c0_30, %c0_31] : memref<128x128xf32, #tpu.memory_space<vmem>>, vector<128x128xf32>
    %cst_32 = arith.constant dense<0.000000e+00> : vector<8x128xf32>
    %49 = tpu.matmul %43, %48, %cst_32 {dimension_numbers = #tpu.dot_dimension_numbers<[1], [0], [0], [1], [0, 0, 1, 1], [], []>} : vector<8x128xf32>, vector<128x128xf32>, vector<8x128xf32> -> vector<8x128xf32>
    %50 = arith.index_cast %c4_i32 : i32 to index
    %c0_33 = arith.constant 0 : index
    %c0_34 = arith.constant 0 : index
    %51 = vector.load %arg2[%50, %c0_33, %c0_34] : memref<8x8x128xf32, #tpu.memory_space<vmem>>, vector<1x8x128xf32>
    %52 = vector.shape_cast %51 : vector<1x8x128xf32> to vector<8x128xf32>
    %53 = arith.addf %52, %49 : vector<8x128xf32>
    %54 = math.tanh %53 : vector<8x128xf32>
    %55 = arith.index_cast %c4_i32 : i32 to index
    %c0_35 = arith.constant 0 : index
    %c0_36 = arith.constant 0 : index
    %56 = vector.load %arg4[%55, %c0_35, %c0_36] : memref<8x8x128xf32, #tpu.memory_space<vmem>>, vector<1x8x128xf32>
    %57 = vector.shape_cast %56 : vector<1x8x128xf32> to vector<8x128xf32>
    %58 = vector.shape_cast %54 : vector<8x128xf32> to vector<1x8x128xf32>
    tpu.vector_store %arg4[%55, %c0_35, %c0_36], %58 {strides = array<i32>} : memref<8x8x128xf32, #tpu.memory_space<vmem>>, vector<1x8x128xf32>,
    %c5_i32 = arith.constant 5 : i32
    %c0_37 = arith.constant 0 : index
    %c0_38 = arith.constant 0 : index
    %59 = vector.load %arg3[%c0_37, %c0_38] : memref<128x128xf32, #tpu.memory_space<vmem>>, vector<128x128xf32>
    %cst_39 = arith.constant dense<0.000000e+00> : vector<8x128xf32>
    %60 = tpu.matmul %54, %59, %cst_39 {dimension_numbers = #tpu.dot_dimension_numbers<[1], [0], [0], [1], [0, 0, 1, 1], [], []>} : vector<8x128xf32>, vector<128x128xf32>, vector<8x128xf32> -> vector<8x128xf32>
    %61 = arith.index_cast %c5_i32 : i32 to index
    %c0_40 = arith.constant 0 : index
    %c0_41 = arith.constant 0 : index
    %62 = vector.load %arg2[%61, %c0_40, %c0_41] : memref<8x8x128xf32, #tpu.memory_space<vmem>>, vector<1x8x128xf32>
    %63 = vector.shape_cast %62 : vector<1x8x128xf32> to vector<8x128xf32>
    %64 = arith.addf %63, %60 : vector<8x128xf32>
    %65 = math.tanh %64 : vector<8x128xf32>
    %66 = arith.index_cast %c5_i32 : i32 to index
    %c0_42 = arith.constant 0 : index
    %c0_43 = arith.constant 0 : index
    %67 = vector.load %arg4[%66, %c0_42, %c0_43] : memref<8x8x128xf32, #tpu.memory_space<vmem>>, vector<1x8x128xf32>
    %68 = vector.shape_cast %67 : vector<1x8x128xf32> to vector<8x128xf32>
    %69 = vector.shape_cast %65 : vector<8x128xf32> to vector<1x8x128xf32>
    tpu.vector_store %arg4[%66, %c0_42, %c0_43], %69 {strides = array<i32>} : memref<8x8x128xf32, #tpu.memory_space<vmem>>, vector<1x8x128xf32>,
    %c6_i32 = arith.constant 6 : i32
    %c0_44 = arith.constant 0 : index
    %c0_45 = arith.constant 0 : index
    %70 = vector.load %arg3[%c0_44, %c0_45] : memref<128x128xf32, #tpu.memory_space<vmem>>, vector<128x128xf32>
    %cst_46 = arith.constant dense<0.000000e+00> : vector<8x128xf32>
    %71 = tpu.matmul %65, %70, %cst_46 {dimension_numbers = #tpu.dot_dimension_numbers<[1], [0], [0], [1], [0, 0, 1, 1], [], []>} : vector<8x128xf32>, vector<128x128xf32>, vector<8x128xf32> -> vector<8x128xf32>
    %72 = arith.index_cast %c6_i32 : i32 to index
    %c0_47 = arith.constant 0 : index
    %c0_48 = arith.constant 0 : index
    %73 = vector.load %arg2[%72, %c0_47, %c0_48] : memref<8x8x128xf32, #tpu.memory_space<vmem>>, vector<1x8x128xf32>
    %74 = vector.shape_cast %73 : vector<1x8x128xf32> to vector<8x128xf32>
    %75 = arith.addf %74, %71 : vector<8x128xf32>
    %76 = math.tanh %75 : vector<8x128xf32>
    %77 = arith.index_cast %c6_i32 : i32 to index
    %c0_49 = arith.constant 0 : index
    %c0_50 = arith.constant 0 : index
    %78 = vector.load %arg4[%77, %c0_49, %c0_50] : memref<8x8x128xf32, #tpu.memory_space<vmem>>, vector<1x8x128xf32>
    %79 = vector.shape_cast %78 : vector<1x8x128xf32> to vector<8x128xf32>
    %80 = vector.shape_cast %76 : vector<8x128xf32> to vector<1x8x128xf32>
    tpu.vector_store %arg4[%77, %c0_49, %c0_50], %80 {strides = array<i32>} : memref<8x8x128xf32, #tpu.memory_space<vmem>>, vector<1x8x128xf32>,
    %c7_i32 = arith.constant 7 : i32
    %c0_51 = arith.constant 0 : index
    %c0_52 = arith.constant 0 : index
    %81 = vector.load %arg3[%c0_51, %c0_52] : memref<128x128xf32, #tpu.memory_space<vmem>>, vector<128x128xf32>
    %cst_53 = arith.constant dense<0.000000e+00> : vector<8x128xf32>
    %82 = tpu.matmul %76, %81, %cst_53 {dimension_numbers = #tpu.dot_dimension_numbers<[1], [0], [0], [1], [0, 0, 1, 1], [], []>} : vector<8x128xf32>, vector<128x128xf32>, vector<8x128xf32> -> vector<8x128xf32>
    %83 = arith.index_cast %c7_i32 : i32 to index
    %c0_54 = arith.constant 0 : index
    %c0_55 = arith.constant 0 : index
    %84 = vector.load %arg2[%83, %c0_54, %c0_55] : memref<8x8x128xf32, #tpu.memory_space<vmem>>, vector<1x8x128xf32>
    %85 = vector.shape_cast %84 : vector<1x8x128xf32> to vector<8x128xf32>
    %86 = arith.addf %85, %82 : vector<8x128xf32>
    %87 = math.tanh %86 : vector<8x128xf32>
    %88 = arith.index_cast %c7_i32 : i32 to index
    %c0_56 = arith.constant 0 : index
    %c0_57 = arith.constant 0 : index
    %89 = vector.load %arg4[%88, %c0_56, %c0_57] : memref<8x8x128xf32, #tpu.memory_space<vmem>>, vector<1x8x128xf32>
    %90 = vector.shape_cast %89 : vector<1x8x128xf32> to vector<8x128xf32>
    %91 = vector.shape_cast %87 : vector<8x128xf32> to vector<1x8x128xf32>
    tpu.vector_store %arg4[%88, %c0_56, %c0_57], %91 {strides = array<i32>} : memref<8x8x128xf32, #tpu.memory_space<vmem>>, vector<1x8x128xf32>,
    %c8_i32 = arith.constant 8 : i32
    %c0_58 = arith.constant 0 : index
    %c0_59 = arith.constant 0 : index
    %92 = vector.load %arg5[%c0_58, %c0_59] : memref<8x128xf32, #tpu.memory_space<vmem>>, vector<8x128xf32>
    tpu.vector_store %arg5[%c0_58, %c0_59], %87 {strides = array<i32>} : memref<8x128xf32, #tpu.memory_space<vmem>>, vector<8x128xf32>,
    return
  }
  func.func @transform_0(%arg0: i32, %arg1: i32) -> (i32, i32, i32) {
    %c0_i32 = arith.constant 0 : i32
    %c0_i32_0 = arith.constant 0 : i32
    return %arg1, %arg0, %c0_i32 : i32, i32, i32
  }
  func.func @transform_1(%arg0: i32, %arg1: i32) -> (i32, i32) {
    %c0_i32 = arith.constant 0 : i32
    %c0_i32_0 = arith.constant 0 : i32
    %c0_i32_1 = arith.constant 0 : i32
    return %c0_i32, %c0_i32_0 : i32, i32
  }
  func.func @transform_2(%arg0: i32, %arg1: i32) -> (i32, i32, i32) {
    %c0_i32 = arith.constant 0 : i32
    %c0_i32_0 = arith.constant 0 : i32
    return %arg1, %arg0, %c0_i32 : i32, i32, i32
  }
}

module attributes {stable_mosaic.version = 11 : i64} {
  func.func @_out_net_kernel(%arg0: i32, %arg1: memref<64x128xf32, #tpu.memory_space<vmem>>, %arg2: memref<64x1xf32, #tpu.memory_space<vmem>>, %arg3: memref<128x128xf32, #tpu.memory_space<vmem>>, %arg4: memref<1x128xf32, #tpu.memory_space<vmem>>, %arg5: memref<128x128xf32, #tpu.memory_space<vmem>>, %arg6: memref<1x128xf32, #tpu.memory_space<vmem>>, %arg7: memref<128x128xf32, #tpu.memory_space<vmem>>, %arg8: memref<1x128xf32, #tpu.memory_space<vmem>>, %arg9: memref<64x128xf32, #tpu.memory_space<vmem>>) attributes {dimension_semantics = [#tpu.dimension_semantics<parallel>], iteration_bounds = array<i64: 1>, scalar_prefetch = 0 : i64, scratch_operands = 0 : i64, tpu.core_type = #tpu.core_type<tc>, window_params = [{transform_indices = @transform_0, window_bounds = array<i64: 64, 128>}, {transform_indices = @transform_1, window_bounds = array<i64: 64, 1>}, {pipeline_mode = #tpu.pipeline_mode<synchronous>, transform_indices = @transform_2, window_bounds = array<i64: 128, 128>}, {pipeline_mode = #tpu.pipeline_mode<synchronous>, transform_indices = @transform_3, window_bounds = array<i64: 1, 128>}, {pipeline_mode = #tpu.pipeline_mode<synchronous>, transform_indices = @transform_4, window_bounds = array<i64: 128, 128>}, {pipeline_mode = #tpu.pipeline_mode<synchronous>, transform_indices = @transform_5, window_bounds = array<i64: 1, 128>}, {pipeline_mode = #tpu.pipeline_mode<synchronous>, transform_indices = @transform_6, window_bounds = array<i64: 128, 128>}, {pipeline_mode = #tpu.pipeline_mode<synchronous>, transform_indices = @transform_7, window_bounds = array<i64: 1, 128>}, {transform_indices = @transform_8, window_bounds = array<i64: 64, 128>}]} {
    %c0 = arith.constant 0 : index
    %c0_0 = arith.constant 0 : index
    %0 = vector.load %arg3[%c0, %c0_0] : memref<128x128xf32, #tpu.memory_space<vmem>>, vector<128x128xf32>
    %c0_1 = arith.constant 0 : index
    %c0_2 = arith.constant 0 : index
    %1 = vector.load %arg5[%c0_1, %c0_2] : memref<128x128xf32, #tpu.memory_space<vmem>>, vector<128x128xf32>
    %c0_3 = arith.constant 0 : index
    %c0_4 = arith.constant 0 : index
    %2 = vector.load %arg7[%c0_3, %c0_4] : memref<128x128xf32, #tpu.memory_space<vmem>>, vector<128x128xf32>
    %c0_5 = arith.constant 0 : index
    %c0_6 = arith.constant 0 : index
    %3 = vector.load %arg1[%c0_5, %c0_6] : memref<64x128xf32, #tpu.memory_space<vmem>>, vector<64x128xf32>
    %cst = arith.constant 0.000000e+00 : f32
    %4 = vector.broadcast %cst : f32 to vector<64x128xf32>
    %5 = arith.maximumf %3, %4 : vector<64x128xf32>
    %cst_7 = arith.constant dense<0.000000e+00> : vector<64x128xf32>
    %6 = tpu.matmul %5, %0, %cst_7 {dimension_numbers = #tpu.dot_dimension_numbers<[1], [0], [0], [1], [0, 0, 1, 1], [], []>} : vector<64x128xf32>, vector<128x128xf32>, vector<64x128xf32> -> vector<64x128xf32>
    %c0_8 = arith.constant 0 : index
    %c0_9 = arith.constant 0 : index
    %7 = vector.load %arg4[%c0_8, %c0_9] : memref<1x128xf32, #tpu.memory_space<vmem>>, vector<1x128xf32>
    %8 = vector.broadcast %7 : vector<1x128xf32> to vector<64x128xf32>
    %9 = arith.addf %6, %8 : vector<64x128xf32>
    %cst_10 = arith.constant 0.000000e+00 : f32
    %10 = vector.broadcast %cst_10 : f32 to vector<64x128xf32>
    %11 = arith.maximumf %9, %10 : vector<64x128xf32>
    %cst_11 = arith.constant dense<0.000000e+00> : vector<64x128xf32>
    %12 = tpu.matmul %11, %1, %cst_11 {dimension_numbers = #tpu.dot_dimension_numbers<[1], [0], [0], [1], [0, 0, 1, 1], [], []>} : vector<64x128xf32>, vector<128x128xf32>, vector<64x128xf32> -> vector<64x128xf32>
    %c0_12 = arith.constant 0 : index
    %c0_13 = arith.constant 0 : index
    %13 = vector.load %arg6[%c0_12, %c0_13] : memref<1x128xf32, #tpu.memory_space<vmem>>, vector<1x128xf32>
    %14 = vector.broadcast %13 : vector<1x128xf32> to vector<64x128xf32>
    %15 = arith.addf %12, %14 : vector<64x128xf32>
    %cst_14 = arith.constant 0.000000e+00 : f32
    %16 = vector.broadcast %cst_14 : f32 to vector<64x128xf32>
    %17 = arith.maximumf %15, %16 : vector<64x128xf32>
    %cst_15 = arith.constant dense<0.000000e+00> : vector<64x128xf32>
    %18 = tpu.matmul %17, %2, %cst_15 {dimension_numbers = #tpu.dot_dimension_numbers<[1], [0], [0], [1], [0, 0, 1, 1], [], []>} : vector<64x128xf32>, vector<128x128xf32>, vector<64x128xf32> -> vector<64x128xf32>
    %c0_16 = arith.constant 0 : index
    %c0_17 = arith.constant 0 : index
    %19 = vector.load %arg8[%c0_16, %c0_17] : memref<1x128xf32, #tpu.memory_space<vmem>>, vector<1x128xf32>
    %20 = vector.broadcast %19 : vector<1x128xf32> to vector<64x128xf32>
    %21 = arith.addf %18, %20 : vector<64x128xf32>
    %c0_18 = arith.constant 0 : index
    %c0_19 = arith.constant 0 : index
    %22 = vector.load %arg2[%c0_18, %c0_19] : memref<64x1xf32, #tpu.memory_space<vmem>>, vector<64x1xf32>
    %23 = vector.broadcast %22 : vector<64x1xf32> to vector<64x128xf32>
    %24 = arith.mulf %21, %23 : vector<64x128xf32>
    %c0_20 = arith.constant 0 : index
    %c0_21 = arith.constant 0 : index
    %25 = vector.load %arg9[%c0_20, %c0_21] : memref<64x128xf32, #tpu.memory_space<vmem>>, vector<64x128xf32>
    tpu.vector_store %arg9[%c0_20, %c0_21], %24 {strides = array<i32>} : memref<64x128xf32, #tpu.memory_space<vmem>>, vector<64x128xf32>,
    return
  }
  func.func @transform_0(%arg0: i32) -> (i32, i32) {
    %c0_i32 = arith.constant 0 : i32
    %c0_i32_0 = arith.constant 0 : i32
    return %arg0, %c0_i32 : i32, i32
  }
  func.func @transform_1(%arg0: i32) -> (i32, i32) {
    %c0_i32 = arith.constant 0 : i32
    %c0_i32_0 = arith.constant 0 : i32
    return %arg0, %c0_i32 : i32, i32
  }
  func.func @transform_2(%arg0: i32) -> (i32, i32) {
    %c0_i32 = arith.constant 0 : i32
    %c0_i32_0 = arith.constant 0 : i32
    %c0_i32_1 = arith.constant 0 : i32
    return %c0_i32, %c0_i32_0 : i32, i32
  }
  func.func @transform_3(%arg0: i32) -> (i32, i32) {
    %c0_i32 = arith.constant 0 : i32
    %c0_i32_0 = arith.constant 0 : i32
    %c0_i32_1 = arith.constant 0 : i32
    return %c0_i32, %c0_i32_0 : i32, i32
  }
  func.func @transform_4(%arg0: i32) -> (i32, i32) {
    %c0_i32 = arith.constant 0 : i32
    %c0_i32_0 = arith.constant 0 : i32
    %c0_i32_1 = arith.constant 0 : i32
    return %c0_i32, %c0_i32_0 : i32, i32
  }
  func.func @transform_5(%arg0: i32) -> (i32, i32) {
    %c0_i32 = arith.constant 0 : i32
    %c0_i32_0 = arith.constant 0 : i32
    %c0_i32_1 = arith.constant 0 : i32
    return %c0_i32, %c0_i32_0 : i32, i32
  }
  func.func @transform_6(%arg0: i32) -> (i32, i32) {
    %c0_i32 = arith.constant 0 : i32
    %c0_i32_0 = arith.constant 0 : i32
    %c0_i32_1 = arith.constant 0 : i32
    return %c0_i32, %c0_i32_0 : i32, i32
  }
  func.func @transform_7(%arg0: i32) -> (i32, i32) {
    %c0_i32 = arith.constant 0 : i32
    %c0_i32_0 = arith.constant 0 : i32
    %c0_i32_1 = arith.constant 0 : i32
    return %c0_i32, %c0_i32_0 : i32, i32
  }
  func.func @transform_8(%arg0: i32) -> (i32, i32) {
    %c0_i32 = arith.constant 0 : i32
    %c0_i32_0 = arith.constant 0 : i32
    return %arg0, %c0_i32 : i32, i32
  }
}

module attributes {stable_mosaic.version = 11 : i64} {
  func.func @_extract_iproj_kernel(%arg0: i32, %arg1: memref<64x16xf32, #tpu.memory_space<vmem>>, %arg2: memref<64x1xf32, #tpu.memory_space<vmem>>, %arg3: memref<16x128xf32, #tpu.memory_space<vmem>>, %arg4: memref<1x128xf32, #tpu.memory_space<vmem>>, %arg5: memref<128x128xf32, #tpu.memory_space<vmem>>, %arg6: memref<1x128xf32, #tpu.memory_space<vmem>>, %arg7: memref<128x128xf32, #tpu.memory_space<vmem>>, %arg8: memref<1x128xf32, #tpu.memory_space<vmem>>, %arg9: memref<128x128xf32, #tpu.memory_space<vmem>>, %arg10: memref<1x128xf32, #tpu.memory_space<vmem>>, %arg11: memref<64x128xf32, #tpu.memory_space<vmem>>, %arg12: memref<64x128xf32, #tpu.memory_space<vmem>>) attributes {dimension_semantics = [#tpu.dimension_semantics<parallel>], iteration_bounds = array<i64: 1>, scalar_prefetch = 0 : i64, scratch_operands = 0 : i64, tpu.core_type = #tpu.core_type<tc>, window_params = [{transform_indices = @transform_0, window_bounds = array<i64: 64, 16>}, {transform_indices = @transform_1, window_bounds = array<i64: 64, 1>}, {pipeline_mode = #tpu.pipeline_mode<synchronous>, transform_indices = @transform_2, window_bounds = array<i64: 16, 128>}, {pipeline_mode = #tpu.pipeline_mode<synchronous>, transform_indices = @transform_3, window_bounds = array<i64: 1, 128>}, {pipeline_mode = #tpu.pipeline_mode<synchronous>, transform_indices = @transform_4, window_bounds = array<i64: 128, 128>}, {pipeline_mode = #tpu.pipeline_mode<synchronous>, transform_indices = @transform_5, window_bounds = array<i64: 1, 128>}, {pipeline_mode = #tpu.pipeline_mode<synchronous>, transform_indices = @transform_6, window_bounds = array<i64: 128, 128>}, {pipeline_mode = #tpu.pipeline_mode<synchronous>, transform_indices = @transform_7, window_bounds = array<i64: 1, 128>}, {pipeline_mode = #tpu.pipeline_mode<synchronous>, transform_indices = @transform_8, window_bounds = array<i64: 128, 128>}, {pipeline_mode = #tpu.pipeline_mode<synchronous>, transform_indices = @transform_9, window_bounds = array<i64: 1, 128>}, {transform_indices = @transform_10, window_bounds = array<i64: 64, 128>}, {transform_indices = @transform_11, window_bounds = array<i64: 64, 128>}]} {
    %c0 = arith.constant 0 : index
    %c0_0 = arith.constant 0 : index
    %0 = vector.load %arg3[%c0, %c0_0] : memref<16x128xf32, #tpu.memory_space<vmem>>, vector<16x128xf32>
    %c0_1 = arith.constant 0 : index
    %c0_2 = arith.constant 0 : index
    %1 = vector.load %arg5[%c0_1, %c0_2] : memref<128x128xf32, #tpu.memory_space<vmem>>, vector<128x128xf32>
    %c0_3 = arith.constant 0 : index
    %c0_4 = arith.constant 0 : index
    %2 = vector.load %arg7[%c0_3, %c0_4] : memref<128x128xf32, #tpu.memory_space<vmem>>, vector<128x128xf32>
    %c0_5 = arith.constant 0 : index
    %c0_6 = arith.constant 0 : index
    %3 = vector.load %arg9[%c0_5, %c0_6] : memref<128x128xf32, #tpu.memory_space<vmem>>, vector<128x128xf32>
    %c0_7 = arith.constant 0 : index
    %c0_8 = arith.constant 0 : index
    %4 = vector.load %arg1[%c0_7, %c0_8] : memref<64x16xf32, #tpu.memory_space<vmem>>, vector<64x16xf32>
    %cst = arith.constant dense<0.000000e+00> : vector<64x128xf32>
    %5 = tpu.matmul %4, %0, %cst {dimension_numbers = #tpu.dot_dimension_numbers<[1], [0], [0], [1], [0, 0, 1, 1], [], []>} : vector<64x16xf32>, vector<16x128xf32>, vector<64x128xf32> -> vector<64x128xf32>
    %c0_9 = arith.constant 0 : index
    %c0_10 = arith.constant 0 : index
    %6 = vector.load %arg4[%c0_9, %c0_10] : memref<1x128xf32, #tpu.memory_space<vmem>>, vector<1x128xf32>
    %7 = vector.broadcast %6 : vector<1x128xf32> to vector<64x128xf32>
    %8 = arith.addf %5, %7 : vector<64x128xf32>
    %cst_11 = arith.constant 0.000000e+00 : f32
    %9 = vector.broadcast %cst_11 : f32 to vector<64x128xf32>
    %10 = arith.maximumf %8, %9 : vector<64x128xf32>
    %cst_12 = arith.constant dense<0.000000e+00> : vector<64x128xf32>
    %11 = tpu.matmul %10, %1, %cst_12 {dimension_numbers = #tpu.dot_dimension_numbers<[1], [0], [0], [1], [0, 0, 1, 1], [], []>} : vector<64x128xf32>, vector<128x128xf32>, vector<64x128xf32> -> vector<64x128xf32>
    %c0_13 = arith.constant 0 : index
    %c0_14 = arith.constant 0 : index
    %12 = vector.load %arg6[%c0_13, %c0_14] : memref<1x128xf32, #tpu.memory_space<vmem>>, vector<1x128xf32>
    %13 = vector.broadcast %12 : vector<1x128xf32> to vector<64x128xf32>
    %14 = arith.addf %11, %13 : vector<64x128xf32>
    %cst_15 = arith.constant 0.000000e+00 : f32
    %15 = vector.broadcast %cst_15 : f32 to vector<64x128xf32>
    %16 = arith.maximumf %14, %15 : vector<64x128xf32>
    %cst_16 = arith.constant dense<0.000000e+00> : vector<64x128xf32>
    %17 = tpu.matmul %16, %2, %cst_16 {dimension_numbers = #tpu.dot_dimension_numbers<[1], [0], [0], [1], [0, 0, 1, 1], [], []>} : vector<64x128xf32>, vector<128x128xf32>, vector<64x128xf32> -> vector<64x128xf32>
    %c0_17 = arith.constant 0 : index
    %c0_18 = arith.constant 0 : index
    %18 = vector.load %arg8[%c0_17, %c0_18] : memref<1x128xf32, #tpu.memory_space<vmem>>, vector<1x128xf32>
    %19 = vector.broadcast %18 : vector<1x128xf32> to vector<64x128xf32>
    %20 = arith.addf %17, %19 : vector<64x128xf32>
    %c0_19 = arith.constant 0 : index
    %c0_20 = arith.constant 0 : index
    %21 = vector.load %arg2[%c0_19, %c0_20] : memref<64x1xf32, #tpu.memory_space<vmem>>, vector<64x1xf32>
    %22 = vector.broadcast %21 : vector<64x1xf32> to vector<64x128xf32>
    %23 = arith.mulf %20, %22 : vector<64x128xf32>
    %c0_21 = arith.constant 0 : index
    %c0_22 = arith.constant 0 : index
    %24 = vector.load %arg11[%c0_21, %c0_22] : memref<64x128xf32, #tpu.memory_space<vmem>>, vector<64x128xf32>
    tpu.vector_store %arg11[%c0_21, %c0_22], %23 {strides = array<i32>} : memref<64x128xf32, #tpu.memory_space<vmem>>, vector<64x128xf32>,
    %cst_23 = arith.constant 0.000000e+00 : f32
    %25 = vector.broadcast %cst_23 : f32 to vector<64x128xf32>
    %26 = arith.maximumf %23, %25 : vector<64x128xf32>
    %cst_24 = arith.constant dense<0.000000e+00> : vector<64x128xf32>
    %27 = tpu.matmul %26, %3, %cst_24 {dimension_numbers = #tpu.dot_dimension_numbers<[1], [0], [0], [1], [0, 0, 1, 1], [], []>} : vector<64x128xf32>, vector<128x128xf32>, vector<64x128xf32> -> vector<64x128xf32>
    %c0_25 = arith.constant 0 : index
    %c0_26 = arith.constant 0 : index
    %28 = vector.load %arg10[%c0_25, %c0_26] : memref<1x128xf32, #tpu.memory_space<vmem>>, vector<1x128xf32>
    %29 = vector.broadcast %28 : vector<1x128xf32> to vector<64x128xf32>
    %30 = arith.addf %27, %29 : vector<64x128xf32>
    %c0_27 = arith.constant 0 : index
    %c0_28 = arith.constant 0 : index
    %31 = vector.load %arg12[%c0_27, %c0_28] : memref<64x128xf32, #tpu.memory_space<vmem>>, vector<64x128xf32>
    tpu.vector_store %arg12[%c0_27, %c0_28], %30 {strides = array<i32>} : memref<64x128xf32, #tpu.memory_space<vmem>>, vector<64x128xf32>,
    return
  }
  func.func @transform_0(%arg0: i32) -> (i32, i32) {
    %c0_i32 = arith.constant 0 : i32
    %c0_i32_0 = arith.constant 0 : i32
    return %arg0, %c0_i32 : i32, i32
  }
  func.func @transform_1(%arg0: i32) -> (i32, i32) {
    %c0_i32 = arith.constant 0 : i32
    %c0_i32_0 = arith.constant 0 : i32
    return %arg0, %c0_i32 : i32, i32
  }
  func.func @transform_2(%arg0: i32) -> (i32, i32) {
    %c0_i32 = arith.constant 0 : i32
    %c0_i32_0 = arith.constant 0 : i32
    %c0_i32_1 = arith.constant 0 : i32
    return %c0_i32, %c0_i32_0 : i32, i32
  }
  func.func @transform_3(%arg0: i32) -> (i32, i32) {
    %c0_i32 = arith.constant 0 : i32
    %c0_i32_0 = arith.constant 0 : i32
    %c0_i32_1 = arith.constant 0 : i32
    return %c0_i32, %c0_i32_0 : i32, i32
  }
  func.func @transform_4(%arg0: i32) -> (i32, i32) {
    %c0_i32 = arith.constant 0 : i32
    %c0_i32_0 = arith.constant 0 : i32
    %c0_i32_1 = arith.constant 0 : i32
    return %c0_i32, %c0_i32_0 : i32, i32
  }
  func.func @transform_5(%arg0: i32) -> (i32, i32) {
    %c0_i32 = arith.constant 0 : i32
    %c0_i32_0 = arith.constant 0 : i32
    %c0_i32_1 = arith.constant 0 : i32
    return %c0_i32, %c0_i32_0 : i32, i32
  }
  func.func @transform_6(%arg0: i32) -> (i32, i32) {
    %c0_i32 = arith.constant 0 : i32
    %c0_i32_0 = arith.constant 0 : i32
    %c0_i32_1 = arith.constant 0 : i32
    return %c0_i32, %c0_i32_0 : i32, i32
  }
  func.func @transform_7(%arg0: i32) -> (i32, i32) {
    %c0_i32 = arith.constant 0 : i32
    %c0_i32_0 = arith.constant 0 : i32
    %c0_i32_1 = arith.constant 0 : i32
    return %c0_i32, %c0_i32_0 : i32, i32
  }
  func.func @transform_8(%arg0: i32) -> (i32, i32) {
    %c0_i32 = arith.constant 0 : i32
    %c0_i32_0 = arith.constant 0 : i32
    %c0_i32_1 = arith.constant 0 : i32
    return %c0_i32, %c0_i32_0 : i32, i32
  }
  func.func @transform_9(%arg0: i32) -> (i32, i32) {
    %c0_i32 = arith.constant 0 : i32
    %c0_i32_0 = arith.constant 0 : i32
    %c0_i32_1 = arith.constant 0 : i32
    return %c0_i32, %c0_i32_0 : i32, i32
  }
  func.func @transform_10(%arg0: i32) -> (i32, i32) {
    %c0_i32 = arith.constant 0 : i32
    %c0_i32_0 = arith.constant 0 : i32
    return %arg0, %c0_i32 : i32, i32
  }
  func.func @transform_11(%arg0: i32) -> (i32, i32) {
    %c0_i32 = arith.constant 0 : i32
    %c0_i32_0 = arith.constant 0 : i32
    return %arg0, %c0_i32 : i32, i32
  }
}

</mosaic_0001>

<llo_original>
// kernel: my_rnn_skip_nocat.5
$region0: #{my_rnn_skip_nocat.5}
  #allocation0 [shape = 'u32[]', space=smem, size = 0x4, offset = 0x4, fixed_abs, tag = 'smem constant byte address 0x4 - core index']
  #allocation1 [shape = 'u32[144,128]{1,0:T(1,128)}', space=vmem, size = 0x12000, scoped, tag = 'internal scratch']
  %s0 = inlined_call_operand.vmem [shape: f32[64,128], index: 0, kind: input, shape index: {}]
  %s1 = inlined_call_operand.vmem [shape: f32[64,1], index: 1, kind: input, shape index: {}]
  %s2 = inlined_call_operand.vmem [shape: f32[128,128], index: 2, kind: input, shape index: {}]
  %s3 = inlined_call_operand.vmem [shape: f32[1,128], index: 3, kind: input, shape index: {}]
  %s4 = inlined_call_operand.vmem [shape: f32[128,128], index: 4, kind: input, shape index: {}]
  %s5 = inlined_call_operand.vmem [shape: f32[1,128], index: 5, kind: input, shape index: {}]
  %s6 = inlined_call_operand.vmem [shape: f32[128,128], index: 6, kind: input, shape index: {}]
  %s7 = inlined_call_operand.vmem [shape: f32[1,128], index: 7, kind: input, shape index: {}]
  %s8 = inlined_call_operand.vmem [shape: f32[64,128], index: 8, kind: output, shape index: {}]
  %s9 = sld [smem:[#allocation0]]
  $region42: #{my_rnn_skip_nocat.5} parent=0
    _
  %s11 = ssub.s32 1, %s9
  %s12 = scalar_select 0, %s11, %s9
  // Predicated region
  $region2: #{my_rnn_skip_nocat.5} parent=0 // pred_check
    _
  $region3: #{my_rnn_skip_nocat.5} parent=0 // pred_check_branch
    %14 = sbr.rel (0) target = $region5
  $region4: #{my_rnn_skip_nocat.5} parent=0 // pred_region
    _
  $region5: #{my_rnn_skip_nocat.5} parent=0 // pred_fallthru
    _
  // Predicated region
  $region6: #{my_rnn_skip_nocat.5} parent=0 // pred_check
    _
  $region7: #{my_rnn_skip_nocat.5} parent=0 // pred_check_branch
    %16 = sbr.rel (0) target = $region9
  $region8: #{my_rnn_skip_nocat.5} parent=0 // pred_region
    _
  $region9: #{my_rnn_skip_nocat.5} parent=0 // pred_fallthru
    _
  // Predicated region
  $region10: #{my_rnn_skip_nocat.5} parent=0 // pred_check
    _
  $region11: #{my_rnn_skip_nocat.5} parent=0 // pred_check_branch
    %18 = sbr.rel (0) target = $region13
  $region12: #{my_rnn_skip_nocat.5} parent=0 // pred_region
    _
  $region13: #{my_rnn_skip_nocat.5} parent=0 // pred_fallthru
    _
  // Predicated region
  $region14: #{my_rnn_skip_nocat.5} parent=0 // pred_check
    _
  $region15: #{my_rnn_skip_nocat.5} parent=0 // pred_check_branch
    %20 = sbr.rel (0) target = $region17
  $region16: #{my_rnn_skip_nocat.5} parent=0 // pred_region
    _
  $region17: #{my_rnn_skip_nocat.5} parent=0 // pred_fallthru
    _
  // Predicated region
  $region18: #{my_rnn_skip_nocat.5} parent=0 // pred_check
    _
  $region19: #{my_rnn_skip_nocat.5} parent=0 // pred_check_branch
    %22 = sbr.rel (0) target = $region21
  $region20: #{my_rnn_skip_nocat.5} parent=0 // pred_region
    _
  $region21: #{my_rnn_skip_nocat.5} parent=0 // pred_fallthru
    _
  // Predicated region
  $region22: #{my_rnn_skip_nocat.5} parent=0 // pred_check
    _
  $region23: #{my_rnn_skip_nocat.5} parent=0 // pred_check_branch
    %24 = sbr.rel (0) target = $region25
  $region24: #{my_rnn_skip_nocat.5} parent=0 // pred_region
    _
  $region25: #{my_rnn_skip_nocat.5} parent=0 // pred_fallthru
    _
  // Predicated region
  $region26: #{my_rnn_skip_nocat.5} parent=0 // pred_check
    _
  $region27: #{my_rnn_skip_nocat.5} parent=0 // pred_check_branch
    %26 = sbr.rel (0) target = $region29
  $region28: #{my_rnn_skip_nocat.5} parent=0 // pred_region
    _
  $region29: #{my_rnn_skip_nocat.5} parent=0 // pred_fallthru
    _
  // Predicated region
  $region30: #{my_rnn_skip_nocat.5} parent=0 // pred_check
    _
  $region31: #{my_rnn_skip_nocat.5} parent=0 // pred_check_branch
    %28 = sbr.rel (0) target = $region33
  $region32: #{my_rnn_skip_nocat.5} parent=0 // pred_region
    _
  $region33: #{my_rnn_skip_nocat.5} parent=0 // pred_fallthru
    _
  %v29 = vld [vmem:[%s2] sm:$0xff]
  %v30 = vld [vmem:[%s2 + $0x8] sm:$0xff]
  %v31 = vld [vmem:[%s2 + $0x10] sm:$0xff]
  %v32 = vld [vmem:[%s2 + $0x18] sm:$0xff]
  %v33 = vld [vmem:[%s2 + $0x20] sm:$0xff]
  %v34 = vld [vmem:[%s2 + $0x28] sm:$0xff]
  %v35 = vld [vmem:[%s2 + $0x30] sm:$0xff]
  %v36 = vld [vmem:[%s2 + $0x38] sm:$0xff]
  %v37 = vld [vmem:[%s2 + $0x40] sm:$0xff]
  %v38 = vld [vmem:[%s2 + $0x48] sm:$0xff]
  %v39 = vld [vmem:[%s2 + $0x50] sm:$0xff]
  %v40 = vld [vmem:[%s2 + $0x58] sm:$0xff]
  %v41 = vld [vmem:[%s2 + $0x60] sm:$0xff]
  %v42 = vld [vmem:[%s2 + $0x68] sm:$0xff]
  %v43 = vld [vmem:[%s2 + $0x70] sm:$0xff]
  %v44 = vld [vmem:[%s2 + $0x78] sm:$0xff]
  %v45 = vld [vmem:[%s4] sm:$0xff]
  %v46 = vld [vmem:[%s4 + $0x8] sm:$0xff]
  %v47 = vld [vmem:[%s4 + $0x10] sm:$0xff]
  %v48 = vld [vmem:[%s4 + $0x18] sm:$0xff]
  %v49 = vld [vmem:[%s4 + $0x20] sm:$0xff]
  %v50 = vld [vmem:[%s4 + $0x28] sm:$0xff]
  %v51 = vld [vmem:[%s4 + $0x30] sm:$0xff]
  %v52 = vld [vmem:[%s4 + $0x38] sm:$0xff]
  %v53 = vld [vmem:[%s4 + $0x40] sm:$0xff]
  %v54 = vld [vmem:[%s4 + $0x48] sm:$0xff]
  %v55 = vld [vmem:[%s4 + $0x50] sm:$0xff]
  %v56 = vld [vmem:[%s4 + $0x58] sm:$0xff]
  %v57 = vld [vmem:[%s4 + $0x60] sm:$0xff]
  %v58 = vld [vmem:[%s4 + $0x68] sm:$0xff]
  %v59 = vld [vmem:[%s4 + $0x70] sm:$0xff]
  %v60 = vld [vmem:[%s4 + $0x78] sm:$0xff]
  %v61 = vld [vmem:[%s6] sm:$0xff]
  %v62 = vld [vmem:[%s6 + $0x8] sm:$0xff]
  %v63 = vld [vmem:[%s6 + $0x10] sm:$0xff]
  %v64 = vld [vmem:[%s6 + $0x18] sm:$0xff]
  %v65 = vld [vmem:[%s6 + $0x20] sm:$0xff]
  %v66 = vld [vmem:[%s6 + $0x28] sm:$0xff]
  %v67 = vld [vmem:[%s6 + $0x30] sm:$0xff]
  %v68 = vld [vmem:[%s6 + $0x38] sm:$0xff]
  %v69 = vld [vmem:[%s6 + $0x40] sm:$0xff]
  %v70 = vld [vmem:[%s6 + $0x48] sm:$0xff]
  %v71 = vld [vmem:[%s6 + $0x50] sm:$0xff]
  %v72 = vld [vmem:[%s6 + $0x58] sm:$0xff]
  %v73 = vld [vmem:[%s6 + $0x60] sm:$0xff]
  %v74 = vld [vmem:[%s6 + $0x68] sm:$0xff]
  %v75 = vld [vmem:[%s6 + $0x70] sm:$0xff]
  %v76 = vld [vmem:[%s6 + $0x78] sm:$0xff]
  %v77 = vld [vmem:[%s0] sm:$0xff]
  %v78 = vld [vmem:[%s0 + $0x8] sm:$0xff]
  %v79 = vld [vmem:[%s0 + $0x10] sm:$0xff]
  %v80 = vld [vmem:[%s0 + $0x18] sm:$0xff]
  %v81 = vld [vmem:[%s0 + $0x20] sm:$0xff]
  %v82 = vld [vmem:[%s0 + $0x28] sm:$0xff]
  %v83 = vld [vmem:[%s0 + $0x30] sm:$0xff]
  %v84 = vld [vmem:[%s0 + $0x38] sm:$0xff]
  %v85 = vmax.f32 %v77, 0.0
  %v86 = vmax.f32 %v78, 0.0
  %v87 = vmax.f32 %v79, 0.0
  %v88 = vmax.f32 %v80, 0.0
  %v89 = vmax.f32 %v81, 0.0
  %v90 = vmax.f32 %v82, 0.0
  %v91 = vmax.f32 %v83, 0.0
  %v92 = vmax.f32 %v84, 0.0
  %v93 = vld [vmem:[%s3] sm:$0x1]
  %v95 = vlaneseq
  %v96 = vshrl.u32 %v95, 7
  %v97 = vsub.s32 0, %v96
  %v98 = vrot.slane %v93, %v97
  %100 = vmatprep.subr.mxu0 0.0
  %101 = vmatpush1.msra.mxu0 %v29
  %102 = vmatprep.subr.mxu0 0.0
  %103 = vmatpush1.msra.mxu0 %v30
  %104 = vmatprep.subr.mxu0 0.0
  %105 = vmatpush1.msra.mxu0 %v31
  %106 = vmatprep.subr.mxu0 0.0
  %107 = vmatpush1.msra.mxu0 %v32
  %108 = vmatprep.subr.mxu0 0.0
  %109 = vmatpush1.msra.mxu0 %v33
  %110 = vmatprep.subr.mxu0 0.0
  %111 = vmatpush1.msra.mxu0 %v34
  %112 = vmatprep.subr.mxu0 0.0
  %113 = vmatpush1.msra.mxu0 %v35
  %114 = vmatprep.subr.mxu0 0.0
  %115 = vmatpush1.msra.mxu0 %v36
  %116 = vmatprep.subr.mxu0 0.0
  %117 = vmatpush1.msra.mxu0 %v37
  %118 = vmatprep.subr.mxu0 0.0
  %119 = vmatpush1.msra.mxu0 %v38
  %120 = vmatprep.subr.mxu0 0.0
  %121 = vmatpush1.msra.mxu0 %v39
  %122 = vmatprep.subr.mxu0 0.0
  %123 = vmatpush1.msra.mxu0 %v40
  %124 = vmatprep.subr.mxu0 0.0
  %125 = vmatpush1.msra.mxu0 %v41
  %126 = vmatprep.subr.mxu0 0.0
  %127 = vmatpush1.msra.mxu0 %v42
  %128 = vmatprep.subr.mxu0 0.0
  %129 = vmatpush1.msra.mxu0 %v43
  %130 = vmatprep.subr.mxu0 0.0
  %131 = vmatpush1.msra.mxu0 %v44
  %132 = vmatprep.subr.mxu0 0.0
  %133 = vmatpush1.msra.mxu0 0.0
  %134 = vmatprep.subr.mxu0 0.0
  %135 = vmatpush1.msra.mxu0 0.0
  %136 = vmatprep.subr.mxu0 0.0
  %137 = vmatpush1.msra.mxu0 0.0
  %138 = vmatprep.subr.mxu0 0.0
  %139 = vmatpush1.msra.mxu0 0.0
  %140 = vmatprep.subr.mxu0 0.0
  %141 = vmatpush1.msra.mxu0 0.0
  %142 = vmatprep.subr.mxu0 0.0
  %143 = vmatpush1.msra.mxu0 0.0
  %144 = vmatprep.subr.mxu0 0.0
  %145 = vmatpush1.msra.mxu0 0.0
  %146 = vmatprep.subr.mxu0 0.0
  %147 = vmatpush1.msra.mxu0 0.0
  %148 = vmatprep.subr.mxu0 0.0
  %149 = vmatpush1.msra.mxu0 0.0
  %150 = vmatprep.subr.mxu0 0.0
  %151 = vmatpush1.msra.mxu0 0.0
  %152 = vmatprep.subr.mxu0 0.0
  %153 = vmatpush1.msra.mxu0 0.0
  %154 = vmatprep.subr.mxu0 0.0
  %155 = vmatpush1.msra.mxu0 0.0
  %156 = vmatprep.subr.mxu0 0.0
  %157 = vmatpush1.msra.mxu0 0.0
  %158 = vmatprep.subr.mxu0 0.0
  %159 = vmatpush1.msra.mxu0 0.0
  %160 = vmatprep.subr.mxu0 0.0
  %161 = vmatpush1.msra.mxu0 0.0
  %162 = vmatprep.subr.mxu0 0.0
  %163 = vmatpush1.msra.mxu0 0.0
  %164 = vmatprep.mubr.f32.mxu0 0.0
  %165 = vmatmul.mubr.f32.gmra.mrb[0].mxu0 %v85
  %v166 = vpop.f32.mrb[0].mxu0
  %v167 = vadd.f32 %v98, %v166
  %v168 = vpop.f32.mrb[0].mxu0
  %169 = vmatprep.mubr.f32.mxu0 0.0
  %170 = vmatmul.mubr.f32.gmra.mrb[0].mxu0 %v86
  %v171 = vpop.f32.mrb[0].mxu0
  %v172 = vadd.f32 %v98, %v171
  %v173 = vpop.f32.mrb[0].mxu0
  %174 = vmatprep.mubr.f32.mxu0 0.0
  %175 = vmatmul.mubr.f32.gmra.mrb[0].mxu0 %v87
  %v176 = vpop.f32.mrb[0].mxu0
  %v177 = vadd.f32 %v98, %v176
  %v178 = vpop.f32.mrb[0].mxu0
  %179 = vmatprep.mubr.f32.mxu0 0.0
  %180 = vmatmul.mubr.f32.gmra.mrb[0].mxu0 %v88
  %v181 = vpop.f32.mrb[0].mxu0
  %v182 = vadd.f32 %v98, %v181
  %v183 = vpop.f32.mrb[0].mxu0
  %184 = vmatprep.mubr.f32.mxu0 0.0
  %185 = vmatmul.mubr.f32.gmra.mrb[0].mxu0 %v89
  %v186 = vpop.f32.mrb[0].mxu0
  %v187 = vadd.f32 %v98, %v186
  %v188 = vpop.f32.mrb[0].mxu0
  %189 = vmatprep.mubr.f32.mxu0 0.0
  %190 = vmatmul.mubr.f32.gmra.mrb[0].mxu0 %v90
  %v191 = vpop.f32.mrb[0].mxu0
  %v192 = vadd.f32 %v98, %v191
  %v193 = vpop.f32.mrb[0].mxu0
  %194 = vmatprep.mubr.f32.mxu0 0.0
  %195 = vmatmul.mubr.f32.gmra.mrb[0].mxu0 %v91
  %v196 = vpop.f32.mrb[0].mxu0
  %v197 = vadd.f32 %v98, %v196
  %v198 = vpop.f32.mrb[0].mxu0
  %199 = vmatprep.mubr.f32.mxu0 0.0
  %200 = vmatmul.mubr.f32.gmra.mrb[0].mxu0 %v92
  %v201 = vpop.f32.mrb[0].mxu0
  %v202 = vadd.f32 %v98, %v201
  %v203 = vpop.f32.mrb[0].mxu0
  %204 = vdwg.mxu0
  %v205 = vmax.f32 %v167, 0.0
  %v206 = vmax.f32 %v172, 0.0
  %v207 = vmax.f32 %v177, 0.0
  %v208 = vmax.f32 %v182, 0.0
  %v209 = vmax.f32 %v187, 0.0
  %v210 = vmax.f32 %v192, 0.0
  %v211 = vmax.f32 %v197, 0.0
  %v212 = vmax.f32 %v202, 0.0
  %v213 = vld [vmem:[%s5] sm:$0x1]
  %v215 = vlaneseq
  %v216 = vshrl.u32 %v215, 7
  %v217 = vsub.s32 0, %v216
  %v218 = vrot.slane %v213, %v217
  %220 = vmatprep.subr.mxu0 0.0
  %221 = vmatpush1.msra.mxu0 %v45
  %222 = vmatprep.subr.mxu0 0.0
  %223 = vmatpush1.msra.mxu0 %v46
  %224 = vmatprep.subr.mxu0 0.0
  %225 = vmatpush1.msra.mxu0 %v47
  %226 = vmatprep.subr.mxu0 0.0
  %227 = vmatpush1.msra.mxu0 %v48
  %228 = vmatprep.subr.mxu0 0.0
  %229 = vmatpush1.msra.mxu0 %v49
  %230 = vmatprep.subr.mxu0 0.0
  %231 = vmatpush1.msra.mxu0 %v50
  %232 = vmatprep.subr.mxu0 0.0
  %233 = vmatpush1.msra.mxu0 %v51
  %234 = vmatprep.subr.mxu0 0.0
  %235 = vmatpush1.msra.mxu0 %v52
  %236 = vmatprep.subr.mxu0 0.0
  %237 = vmatpush1.msra.mxu0 %v53
  %238 = vmatprep.subr.mxu0 0.0
  %239 = vmatpush1.msra.mxu0 %v54
  %240 = vmatprep.subr.mxu0 0.0
  %241 = vmatpush1.msra.mxu0 %v55
  %242 = vmatprep.subr.mxu0 0.0
  %243 = vmatpush1.msra.mxu0 %v56
  %244 = vmatprep.subr.mxu0 0.0
  %245 = vmatpush1.msra.mxu0 %v57
  %246 = vmatprep.subr.mxu0 0.0
  %247 = vmatpush1.msra.mxu0 %v58
  %248 = vmatprep.subr.mxu0 0.0
  %249 = vmatpush1.msra.mxu0 %v59
  %250 = vmatprep.subr.mxu0 0.0
  %251 = vmatpush1.msra.mxu0 %v60
  %252 = vmatprep.subr.mxu0 0.0
  %253 = vmatpush1.msra.mxu0 0.0
  %254 = vmatprep.subr.mxu0 0.0
  %255 = vmatpush1.msra.mxu0 0.0
  %256 = vmatprep.subr.mxu0 0.0
  %257 = vmatpush1.msra.mxu0 0.0
  %258 = vmatprep.subr.mxu0 0.0
  %259 = vmatpush1.msra.mxu0 0.0
  %260 = vmatprep.subr.mxu0 0.0
  %261 = vmatpush1.msra.mxu0 0.0
  %262 = vmatprep.subr.mxu0 0.0
  %263 = vmatpush1.msra.mxu0 0.0
  %264 = vmatprep.subr.mxu0 0.0
  %265 = vmatpush1.msra.mxu0 0.0
  %266 = vmatprep.subr.mxu0 0.0
  %267 = vmatpush1.msra.mxu0 0.0
  %268 = vmatprep.subr.mxu0 0.0
  %269 = vmatpush1.msra.mxu0 0.0
  %270 = vmatprep.subr.mxu0 0.0
  %271 = vmatpush1.msra.mxu0 0.0
  %272 = vmatprep.subr.mxu0 0.0
  %273 = vmatpush1.msra.mxu0 0.0
  %274 = vmatprep.subr.mxu0 0.0
  %275 = vmatpush1.msra.mxu0 0.0
  %276 = vmatprep.subr.mxu0 0.0
  %277 = vmatpush1.msra.mxu0 0.0
  %278 = vmatprep.subr.mxu0 0.0
  %279 = vmatpush1.msra.mxu0 0.0
  %280 = vmatprep.subr.mxu0 0.0
  %281 = vmatpush1.msra.mxu0 0.0
  %282 = vmatprep.subr.mxu0 0.0
  %283 = vmatpush1.msra.mxu0 0.0
  %284 = vmatprep.mubr.f32.mxu0 0.0
  %285 = vmatmul.mubr.f32.gmra.mrb[0].mxu0 %v205
  %v286 = vpop.f32.mrb[0].mxu0
  %v287 = vadd.f32 %v218, %v286
  %v288 = vpop.f32.mrb[0].mxu0
  %289 = vmatprep.mubr.f32.mxu0 0.0
  %290 = vmatmul.mubr.f32.gmra.mrb[0].mxu0 %v206
  %v291 = vpop.f32.mrb[0].mxu0
  %v292 = vadd.f32 %v218, %v291
  %v293 = vpop.f32.mrb[0].mxu0
  %294 = vmatprep.mubr.f32.mxu0 0.0
  %295 = vmatmul.mubr.f32.gmra.mrb[0].mxu0 %v207
  %v296 = vpop.f32.mrb[0].mxu0
  %v297 = vadd.f32 %v218, %v296
  %v298 = vpop.f32.mrb[0].mxu0
  %299 = vmatprep.mubr.f32.mxu0 0.0
  %300 = vmatmul.mubr.f32.gmra.mrb[0].mxu0 %v208
  %v301 = vpop.f32.mrb[0].mxu0
  %v302 = vadd.f32 %v218, %v301
  %v303 = vpop.f32.mrb[0].mxu0
  %304 = vmatprep.mubr.f32.mxu0 0.0
  %305 = vmatmul.mubr.f32.gmra.mrb[0].mxu0 %v209
  %v306 = vpop.f32.mrb[0].mxu0
  %v307 = vadd.f32 %v218, %v306
  %v308 = vpop.f32.mrb[0].mxu0
  %309 = vmatprep.mubr.f32.mxu0 0.0
  %310 = vmatmul.mubr.f32.gmra.mrb[0].mxu0 %v210
  %v311 = vpop.f32.mrb[0].mxu0
  %v312 = vadd.f32 %v218, %v311
  %v313 = vpop.f32.mrb[0].mxu0
  %314 = vmatprep.mubr.f32.mxu0 0.0
  %315 = vmatmul.mubr.f32.gmra.mrb[0].mxu0 %v211
  %v316 = vpop.f32.mrb[0].mxu0
  %v317 = vadd.f32 %v218, %v316
  %v318 = vpop.f32.mrb[0].mxu0
  %319 = vmatprep.mubr.f32.mxu0 0.0
  %320 = vmatmul.mubr.f32.gmra.mrb[0].mxu0 %v212
  %v321 = vpop.f32.mrb[0].mxu0
  %v322 = vadd.f32 %v218, %v321
  %v323 = vpop.f32.mrb[0].mxu0
  %324 = vdwg.mxu0
  %v325 = vmax.f32 %v287, 0.0
  %v326 = vmax.f32 %v292, 0.0
  %v327 = vmax.f32 %v297, 0.0
  %v328 = vmax.f32 %v302, 0.0
  %v329 = vmax.f32 %v307, 0.0
  %v330 = vmax.f32 %v312, 0.0
  %v331 = vmax.f32 %v317, 0.0
  %v332 = vmax.f32 %v322, 0.0
  %v333 = vld [vmem:[%s7] sm:$0x1]
  %v335 = vlaneseq
  %v336 = vshrl.u32 %v335, 7
  %v337 = vsub.s32 0, %v336
  %v338 = vrot.slane %v333, %v337
  %340 = vmatprep.subr.mxu0 0.0
  %341 = vmatpush1.msra.mxu0 %v61
  %342 = vmatprep.subr.mxu0 0.0
  %343 = vmatpush1.msra.mxu0 %v62
  %344 = vmatprep.subr.mxu0 0.0
  %345 = vmatpush1.msra.mxu0 %v63
  %346 = vmatprep.subr.mxu0 0.0
  %347 = vmatpush1.msra.mxu0 %v64
  %348 = vmatprep.subr.mxu0 0.0
  %349 = vmatpush1.msra.mxu0 %v65
  %350 = vmatprep.subr.mxu0 0.0
  %351 = vmatpush1.msra.mxu0 %v66
  %352 = vmatprep.subr.mxu0 0.0
  %353 = vmatpush1.msra.mxu0 %v67
  %354 = vmatprep.subr.mxu0 0.0
  %355 = vmatpush1.msra.mxu0 %v68
  %356 = vmatprep.subr.mxu0 0.0
  %357 = vmatpush1.msra.mxu0 %v69
  %358 = vmatprep.subr.mxu0 0.0
  %359 = vmatpush1.msra.mxu0 %v70
  %360 = vmatprep.subr.mxu0 0.0
  %361 = vmatpush1.msra.mxu0 %v71
  %362 = vmatprep.subr.mxu0 0.0
  %363 = vmatpush1.msra.mxu0 %v72
  %364 = vmatprep.subr.mxu0 0.0
  %365 = vmatpush1.msra.mxu0 %v73
  %366 = vmatprep.subr.mxu0 0.0
  %367 = vmatpush1.msra.mxu0 %v74
  %368 = vmatprep.subr.mxu0 0.0
  %369 = vmatpush1.msra.mxu0 %v75
  %370 = vmatprep.subr.mxu0 0.0
  %371 = vmatpush1.msra.mxu0 %v76
  %372 = vmatprep.subr.mxu0 0.0
  %373 = vmatpush1.msra.mxu0 0.0
  %374 = vmatprep.subr.mxu0 0.0
  %375 = vmatpush1.msra.mxu0 0.0
  %376 = vmatprep.subr.mxu0 0.0
  %377 = vmatpush1.msra.mxu0 0.0
  %378 = vmatprep.subr.mxu0 0.0
  %379 = vmatpush1.msra.mxu0 0.0
  %380 = vmatprep.subr.mxu0 0.0
  %381 = vmatpush1.msra.mxu0 0.0
  %382 = vmatprep.subr.mxu0 0.0
  %383 = vmatpush1.msra.mxu0 0.0
  %384 = vmatprep.subr.mxu0 0.0
  %385 = vmatpush1.msra.mxu0 0.0
  %386 = vmatprep.subr.mxu0 0.0
  %387 = vmatpush1.msra.mxu0 0.0
  %388 = vmatprep.subr.mxu0 0.0
  %389 = vmatpush1.msra.mxu0 0.0
  %390 = vmatprep.subr.mxu0 0.0
  %391 = vmatpush1.msra.mxu0 0.0
  %392 = vmatprep.subr.mxu0 0.0
  %393 = vmatpush1.msra.mxu0 0.0
  %394 = vmatprep.subr.mxu0 0.0
  %395 = vmatpush1.msra.mxu0 0.0
  %396 = vmatprep.subr.mxu0 0.0
  %397 = vmatpush1.msra.mxu0 0.0
  %398 = vmatprep.subr.mxu0 0.0
  %399 = vmatpush1.msra.mxu0 0.0
  %400 = vmatprep.subr.mxu0 0.0
  %401 = vmatpush1.msra.mxu0 0.0
  %402 = vmatprep.subr.mxu0 0.0
  %403 = vmatpush1.msra.mxu0 0.0
  %404 = vmatprep.mubr.f32.mxu0 0.0
  %405 = vmatmul.mubr.f32.gmra.mrb[0].mxu0 %v325
  %v406 = vpop.f32.mrb[0].mxu0
  %v407 = vadd.f32 %v338, %v406
  %v408 = vpop.f32.mrb[0].mxu0
  %409 = vmatprep.mubr.f32.mxu0 0.0
  %410 = vmatmul.mubr.f32.gmra.mrb[0].mxu0 %v326
  %v411 = vpop.f32.mrb[0].mxu0
  %v412 = vadd.f32 %v338, %v411
  %v413 = vpop.f32.mrb[0].mxu0
  %414 = vmatprep.mubr.f32.mxu0 0.0
  %415 = vmatmul.mubr.f32.gmra.mrb[0].mxu0 %v327
  %v416 = vpop.f32.mrb[0].mxu0
  %v417 = vadd.f32 %v338, %v416
  %v418 = vpop.f32.mrb[0].mxu0
  %419 = vmatprep.mubr.f32.mxu0 0.0
  %420 = vmatmul.mubr.f32.gmra.mrb[0].mxu0 %v328
  %v421 = vpop.f32.mrb[0].mxu0
  %v422 = vadd.f32 %v338, %v421
  %v423 = vpop.f32.mrb[0].mxu0
  %424 = vmatprep.mubr.f32.mxu0 0.0
  %425 = vmatmul.mubr.f32.gmra.mrb[0].mxu0 %v329
  %v426 = vpop.f32.mrb[0].mxu0
  %v427 = vadd.f32 %v338, %v426
  %v428 = vpop.f32.mrb[0].mxu0
  %429 = vmatprep.mubr.f32.mxu0 0.0
  %430 = vmatmul.mubr.f32.gmra.mrb[0].mxu0 %v330
  %v431 = vpop.f32.mrb[0].mxu0
  %v432 = vadd.f32 %v338, %v431
  %v433 = vpop.f32.mrb[0].mxu0
  %434 = vmatprep.mubr.f32.mxu0 0.0
  %435 = vmatmul.mubr.f32.gmra.mrb[0].mxu0 %v331
  %v436 = vpop.f32.mrb[0].mxu0
  %v437 = vadd.f32 %v338, %v436
  %v438 = vpop.f32.mrb[0].mxu0
  %439 = vmatprep.mubr.f32.mxu0 0.0
  %440 = vmatmul.mubr.f32.gmra.mrb[0].mxu0 %v332
  %v441 = vpop.f32.mrb[0].mxu0
  %v442 = vadd.f32 %v338, %v441
  %v443 = vpop.f32.mrb[0].mxu0
  %444 = vdwg.mxu0
  %v445 = vld [vmem:[%s1] sm:$0xff]
  %v446 = vld [vmem:[%s1 + $0x8] sm:$0xff]
  %v447 = vld [vmem:[%s1 + $0x10] sm:$0xff]
  %v448 = vld [vmem:[%s1 + $0x18] sm:$0xff]
  %v449 = vld [vmem:[%s1 + $0x20] sm:$0xff]
  %v450 = vld [vmem:[%s1 + $0x28] sm:$0xff]
  %v451 = vld [vmem:[%s1 + $0x30] sm:$0xff]
  %v452 = vld [vmem:[%s1 + $0x38] sm:$0xff]
  %454 = vset.pattern.permute.xlu0 0
  %455 = vperm.xlu0 %454, %v445
  %v456 = vpop.permute.xlu0 %455
  %459 = vset.pattern.permute.xlu0 0
  %460 = vperm.xlu0 %459, %v446
  %v461 = vpop.permute.xlu0 %460
  %464 = vset.pattern.permute.xlu0 0
  %465 = vperm.xlu0 %464, %v447
  %v466 = vpop.permute.xlu0 %465
  %469 = vset.pattern.permute.xlu0 0
  %470 = vperm.xlu0 %469, %v448
  %v471 = vpop.permute.xlu0 %470
  %474 = vset.pattern.permute.xlu0 0
  %475 = vperm.xlu0 %474, %v449
  %v476 = vpop.permute.xlu0 %475
  %479 = vset.pattern.permute.xlu0 0
  %480 = vperm.xlu0 %479, %v450
  %v481 = vpop.permute.xlu0 %480
  %484 = vset.pattern.permute.xlu0 0
  %485 = vperm.xlu0 %484, %v451
  %v486 = vpop.permute.xlu0 %485
  %489 = vset.pattern.permute.xlu0 0
  %490 = vperm.xlu0 %489, %v452
  %v491 = vpop.permute.xlu0 %490
  %v493 = vmul.f32 %v407, %v456
  %v494 = vmul.f32 %v412, %v461
  %v495 = vmul.f32 %v417, %v466
  %v496 = vmul.f32 %v422, %v471
  %v497 = vmul.f32 %v427, %v476
  %v498 = vmul.f32 %v432, %v481
  %v499 = vmul.f32 %v437, %v486
  %v500 = vmul.f32 %v442, %v491
  %501 = vst [vmem:[%s8] sm:$0xff] %v493
  %502 = vst [vmem:[%s8 + $0x8] sm:$0xff] %v494
  %503 = vst [vmem:[%s8 + $0x10] sm:$0xff] %v495
  %504 = vst [vmem:[%s8 + $0x18] sm:$0xff] %v496
  %505 = vst [vmem:[%s8 + $0x20] sm:$0xff] %v497
  %506 = vst [vmem:[%s8 + $0x28] sm:$0xff] %v498
  %507 = vst [vmem:[%s8 + $0x30] sm:$0xff] %v499
  %508 = vst [vmem:[%s8 + $0x38] sm:$0xff] %v500
  // Predicated region
  $region34: #{my_rnn_skip_nocat.5} parent=0 // pred_check
    _
  $region35: #{my_rnn_skip_nocat.5} parent=0 // pred_check_branch
    %510 = sbr.rel (0) target = $region37
  $region36: #{my_rnn_skip_nocat.5} parent=0 // pred_region
    _
  $region37: #{my_rnn_skip_nocat.5} parent=0 // pred_fallthru
    _
  // Predicated region
  $region38: #{my_rnn_skip_nocat.5} parent=0 // pred_check
    _
  $region39: #{my_rnn_skip_nocat.5} parent=0 // pred_check_branch
    %512 = sbr.rel (0) target = $region41
  $region40: #{my_rnn_skip_nocat.5} parent=0 // pred_region
    _
  $region41: #{my_rnn_skip_nocat.5} parent=0 // pred_fallthru
    _

// kernel: my_rnn_skip_nocat.3
$region0: #{my_rnn_skip_nocat.3}
  #allocation0 [shape = 'u32[]', space=smem, size = 0x4, offset = 0x4, fixed_abs, tag = 'smem constant byte address 0x4 - core index']
  #allocation1 [shape = 'u32[144,128]{1,0:T(1,128)}', space=vmem, size = 0x12000, scoped, tag = 'internal scratch']
  %s0 = inlined_call_operand.vmem [shape: f32[64,16], index: 0, kind: input, shape index: {}]
  %s1 = inlined_call_operand.vmem [shape: f32[64,1], index: 1, kind: input, shape index: {}]
  %s2 = inlined_call_operand.vmem [shape: f32[16,128], index: 2, kind: input, shape index: {}]
  %s3 = inlined_call_operand.vmem [shape: f32[1,128], index: 3, kind: input, shape index: {}]
  %s4 = inlined_call_operand.vmem [shape: f32[128,128], index: 4, kind: input, shape index: {}]
  %s5 = inlined_call_operand.vmem [shape: f32[1,128], index: 5, kind: input, shape index: {}]
  %s6 = inlined_call_operand.vmem [shape: f32[128,128], index: 6, kind: input, shape index: {}]
  %s7 = inlined_call_operand.vmem [shape: f32[1,128], index: 7, kind: input, shape index: {}]
  %s8 = inlined_call_operand.vmem [shape: f32[128,128], index: 8, kind: input, shape index: {}]
  %s9 = inlined_call_operand.vmem [shape: f32[1,128], index: 9, kind: input, shape index: {}]
  %s10 = inlined_call_operand.vmem [shape: f32[64,128], index: 10, kind: output, shape index: {0}]
  %s11 = inlined_call_operand.vmem [shape: f32[64,128], index: 11, kind: output, shape index: {1}]
  %12 = xla_tuple %s10, %s11
  %s13 = sld [smem:[#allocation0]]
  $region58: #{my_rnn_skip_nocat.3} parent=0
    _
  %s15 = ssub.s32 1, %s13
  %s16 = scalar_select 0, %s15, %s13
  // Predicated region
  $region2: #{my_rnn_skip_nocat.3} parent=0 // pred_check
    _
  $region3: #{my_rnn_skip_nocat.3} parent=0 // pred_check_branch
    %18 = sbr.rel (0) target = $region5
  $region4: #{my_rnn_skip_nocat.3} parent=0 // pred_region
    _
  $region5: #{my_rnn_skip_nocat.3} parent=0 // pred_fallthru
    _
  // Predicated region
  $region6: #{my_rnn_skip_nocat.3} parent=0 // pred_check
    _
  $region7: #{my_rnn_skip_nocat.3} parent=0 // pred_check_branch
    %20 = sbr.rel (0) target = $region9
  $region8: #{my_rnn_skip_nocat.3} parent=0 // pred_region
    _
  $region9: #{my_rnn_skip_nocat.3} parent=0 // pred_fallthru
    _
  // Predicated region
  $region10: #{my_rnn_skip_nocat.3} parent=0 // pred_check
    _
  $region11: #{my_rnn_skip_nocat.3} parent=0 // pred_check_branch
    %22 = sbr.rel (0) target = $region13
  $region12: #{my_rnn_skip_nocat.3} parent=0 // pred_region
    _
  $region13: #{my_rnn_skip_nocat.3} parent=0 // pred_fallthru
    _
  // Predicated region
  $region14: #{my_rnn_skip_nocat.3} parent=0 // pred_check
    _
  $region15: #{my_rnn_skip_nocat.3} parent=0 // pred_check_branch
    %24 = sbr.rel (0) target = $region17
  $region16: #{my_rnn_skip_nocat.3} parent=0 // pred_region
    _
  $region17: #{my_rnn_skip_nocat.3} parent=0 // pred_fallthru
    _
  // Predicated region
  $region18: #{my_rnn_skip_nocat.3} parent=0 // pred_check
    _
  $region19: #{my_rnn_skip_nocat.3} parent=0 // pred_check_branch
    %26 = sbr.rel (0) target = $region21
  $region20: #{my_rnn_skip_nocat.3} parent=0 // pred_region
    _
  $region21: #{my_rnn_skip_nocat.3} parent=0 // pred_fallthru
    _
  // Predicated region
  $region22: #{my_rnn_skip_nocat.3} parent=0 // pred_check
    _
  $region23: #{my_rnn_skip_nocat.3} parent=0 // pred_check_branch
    %28 = sbr.rel (0) target = $region25
  $region24: #{my_rnn_skip_nocat.3} parent=0 // pred_region
    _
  $region25: #{my_rnn_skip_nocat.3} parent=0 // pred_fallthru
    _
  // Predicated region
  $region26: #{my_rnn_skip_nocat.3} parent=0 // pred_check
    _
  $region27: #{my_rnn_skip_nocat.3} parent=0 // pred_check_branch
    %30 = sbr.rel (0) target = $region29
  $region28: #{my_rnn_skip_nocat.3} parent=0 // pred_region
    _
  $region29: #{my_rnn_skip_nocat.3} parent=0 // pred_fallthru
    _
  // Predicated region
  $region30: #{my_rnn_skip_nocat.3} parent=0 // pred_check
    _
  $region31: #{my_rnn_skip_nocat.3} parent=0 // pred_check_branch
    %32 = sbr.rel (0) target = $region33
  $region32: #{my_rnn_skip_nocat.3} parent=0 // pred_region
    _
  $region33: #{my_rnn_skip_nocat.3} parent=0 // pred_fallthru
    _
  // Predicated region
  $region34: #{my_rnn_skip_nocat.3} parent=0 // pred_check
    _
  $region35: #{my_rnn_skip_nocat.3} parent=0 // pred_check_branch
    %34 = sbr.rel (0) target = $region37
  $region36: #{my_rnn_skip_nocat.3} parent=0 // pred_region
    _
  $region37: #{my_rnn_skip_nocat.3} parent=0 // pred_fallthru
    _
  // Predicated region
  $region38: #{my_rnn_skip_nocat.3} parent=0 // pred_check
    _
  $region39: #{my_rnn_skip_nocat.3} parent=0 // pred_check_branch
    %36 = sbr.rel (0) target = $region41
  $region40: #{my_rnn_skip_nocat.3} parent=0 // pred_region
    _
  $region41: #{my_rnn_skip_nocat.3} parent=0 // pred_fallthru
    _
  %v37 = vld [vmem:[%s2] sm:$0xff]
  %v38 = vld [vmem:[%s2 + $0x8] sm:$0xff]
  %v39 = vld [vmem:[%s4] sm:$0xff]
  %v40 = vld [vmem:[%s4 + $0x8] sm:$0xff]
  %v41 = vld [vmem:[%s4 + $0x10] sm:$0xff]
  %v42 = vld [vmem:[%s4 + $0x18] sm:$0xff]
  %v43 = vld [vmem:[%s4 + $0x20] sm:$0xff]
  %v44 = vld [vmem:[%s4 + $0x28] sm:$0xff]
  %v45 = vld [vmem:[%s4 + $0x30] sm:$0xff]
  %v46 = vld [vmem:[%s4 + $0x38] sm:$0xff]
  %v47 = vld [vmem:[%s4 + $0x40] sm:$0xff]
  %v48 = vld [vmem:[%s4 + $0x48] sm:$0xff]
  %v49 = vld [vmem:[%s4 + $0x50] sm:$0xff]
  %v50 = vld [vmem:[%s4 + $0x58] sm:$0xff]
  %v51 = vld [vmem:[%s4 + $0x60] sm:$0xff]
  %v52 = vld [vmem:[%s4 + $0x68] sm:$0xff]
  %v53 = vld [vmem:[%s4 + $0x70] sm:$0xff]
  %v54 = vld [vmem:[%s4 + $0x78] sm:$0xff]
  %v55 = vld [vmem:[%s6] sm:$0xff]
  %v56 = vld [vmem:[%s6 + $0x8] sm:$0xff]
  %v57 = vld [vmem:[%s6 + $0x10] sm:$0xff]
  %v58 = vld [vmem:[%s6 + $0x18] sm:$0xff]
  %v59 = vld [vmem:[%s6 + $0x20] sm:$0xff]
  %v60 = vld [vmem:[%s6 + $0x28] sm:$0xff]
  %v61 = vld [vmem:[%s6 + $0x30] sm:$0xff]
  %v62 = vld [vmem:[%s6 + $0x38] sm:$0xff]
  %v63 = vld [vmem:[%s6 + $0x40] sm:$0xff]
  %v64 = vld [vmem:[%s6 + $0x48] sm:$0xff]
  %v65 = vld [vmem:[%s6 + $0x50] sm:$0xff]
  %v66 = vld [vmem:[%s6 + $0x58] sm:$0xff]
  %v67 = vld [vmem:[%s6 + $0x60] sm:$0xff]
  %v68 = vld [vmem:[%s6 + $0x68] sm:$0xff]
  %v69 = vld [vmem:[%s6 + $0x70] sm:$0xff]
  %v70 = vld [vmem:[%s6 + $0x78] sm:$0xff]
  %v71 = vld [vmem:[%s8] sm:$0xff]
  %v72 = vld [vmem:[%s8 + $0x8] sm:$0xff]
  %v73 = vld [vmem:[%s8 + $0x10] sm:$0xff]
  %v74 = vld [vmem:[%s8 + $0x18] sm:$0xff]
  %v75 = vld [vmem:[%s8 + $0x20] sm:$0xff]
  %v76 = vld [vmem:[%s8 + $0x28] sm:$0xff]
  %v77 = vld [vmem:[%s8 + $0x30] sm:$0xff]
  %v78 = vld [vmem:[%s8 + $0x38] sm:$0xff]
  %v79 = vld [vmem:[%s8 + $0x40] sm:$0xff]
  %v80 = vld [vmem:[%s8 + $0x48] sm:$0xff]
  %v81 = vld [vmem:[%s8 + $0x50] sm:$0xff]
  %v82 = vld [vmem:[%s8 + $0x58] sm:$0xff]
  %v83 = vld [vmem:[%s8 + $0x60] sm:$0xff]
  %v84 = vld [vmem:[%s8 + $0x68] sm:$0xff]
  %v85 = vld [vmem:[%s8 + $0x70] sm:$0xff]
  %v86 = vld [vmem:[%s8 + $0x78] sm:$0xff]
  %v87 = vld [vmem:[%s0] sm:$0xff]
  %v88 = vld [vmem:[%s0 + $0x8] sm:$0xff]
  %v89 = vld [vmem:[%s0 + $0x10] sm:$0xff]
  %v90 = vld [vmem:[%s0 + $0x18] sm:$0xff]
  %v91 = vld [vmem:[%s0 + $0x20] sm:$0xff]
  %v92 = vld [vmem:[%s0 + $0x28] sm:$0xff]
  %v93 = vld [vmem:[%s0 + $0x30] sm:$0xff]
  %v94 = vld [vmem:[%s0 + $0x38] sm:$0xff]
  %v95 = vld [vmem:[%s3] sm:$0x1]
  %v97 = vlaneseq
  %v98 = vshrl.u32 %v97, 7
  %v99 = vsub.s32 0, %v98
  %v100 = vrot.slane %v95, %v99
  %vm102 = vcmask 130048
  %v104 = vsel %vm102, %v87, 0
  %v107 = vsel %vm102, %v88, 0
  %v110 = vsel %vm102, %v89, 0
  %v113 = vsel %vm102, %v90, 0
  %v116 = vsel %vm102, %v91, 0
  %v119 = vsel %vm102, %v92, 0
  %v122 = vsel %vm102, %v93, 0
  %v125 = vsel %vm102, %v94, 0
  %127 = vmatprep.subr.mxu0 0.0
  %128 = vmatpush1.msra.mxu0 %v37
  %129 = vmatprep.subr.mxu0 0.0
  %130 = vmatpush1.msra.mxu0 %v38
  %131 = vmatprep.subr.mxu0 0.0
  %132 = vmatpush1.msra.mxu0 0.0
  %133 = vmatprep.subr.mxu0 0.0
  %134 = vmatpush1.msra.mxu0 0.0
  %135 = vmatprep.subr.mxu0 0.0
  %136 = vmatpush1.msra.mxu0 0.0
  %137 = vmatprep.subr.mxu0 0.0
  %138 = vmatpush1.msra.mxu0 0.0
  %139 = vmatprep.subr.mxu0 0.0
  %140 = vmatpush1.msra.mxu0 0.0
  %141 = vmatprep.subr.mxu0 0.0
  %142 = vmatpush1.msra.mxu0 0.0
  %143 = vmatprep.subr.mxu0 0.0
  %144 = vmatpush1.msra.mxu0 0.0
  %145 = vmatprep.subr.mxu0 0.0
  %146 = vmatpush1.msra.mxu0 0.0
  %147 = vmatprep.subr.mxu0 0.0
  %148 = vmatpush1.msra.mxu0 0.0
  %149 = vmatprep.subr.mxu0 0.0
  %150 = vmatpush1.msra.mxu0 0.0
  %151 = vmatprep.subr.mxu0 0.0
  %152 = vmatpush1.msra.mxu0 0.0
  %153 = vmatprep.subr.mxu0 0.0
  %154 = vmatpush1.msra.mxu0 0.0
  %155 = vmatprep.subr.mxu0 0.0
  %156 = vmatpush1.msra.mxu0 0.0
  %157 = vmatprep.subr.mxu0 0.0
  %158 = vmatpush1.msra.mxu0 0.0
  %159 = vmatprep.subr.mxu0 0.0
  %160 = vmatpush1.msra.mxu0 0.0
  %161 = vmatprep.subr.mxu0 0.0
  %162 = vmatpush1.msra.mxu0 0.0
  %163 = vmatprep.subr.mxu0 0.0
  %164 = vmatpush1.msra.mxu0 0.0
  %165 = vmatprep.subr.mxu0 0.0
  %166 = vmatpush1.msra.mxu0 0.0
  %167 = vmatprep.subr.mxu0 0.0
  %168 = vmatpush1.msra.mxu0 0.0
  %169 = vmatprep.subr.mxu0 0.0
  %170 = vmatpush1.msra.mxu0 0.0
  %171 = vmatprep.subr.mxu0 0.0
  %172 = vmatpush1.msra.mxu0 0.0
  %173 = vmatprep.subr.mxu0 0.0
  %174 = vmatpush1.msra.mxu0 0.0
  %175 = vmatprep.subr.mxu0 0.0
  %176 = vmatpush1.msra.mxu0 0.0
  %177 = vmatprep.subr.mxu0 0.0
  %178 = vmatpush1.msra.mxu0 0.0
  %179 = vmatprep.subr.mxu0 0.0
  %180 = vmatpush1.msra.mxu0 0.0
  %181 = vmatprep.subr.mxu0 0.0
  %182 = vmatpush1.msra.mxu0 0.0
  %183 = vmatprep.subr.mxu0 0.0
  %184 = vmatpush1.msra.mxu0 0.0
  %185 = vmatprep.subr.mxu0 0.0
  %186 = vmatpush1.msra.mxu0 0.0
  %187 = vmatprep.subr.mxu0 0.0
  %188 = vmatpush1.msra.mxu0 0.0
  %189 = vmatprep.subr.mxu0 0.0
  %190 = vmatpush1.msra.mxu0 0.0
  %191 = vmatprep.mubr.f32.mxu0 0.0
  %192 = vmatmul.mubr.f32.gmra.mrb[0].mxu0 %v104
  %v193 = vpop.f32.mrb[0].mxu0
  %v194 = vadd.f32 %v100, %v193
  %v195 = vpop.f32.mrb[0].mxu0
  %196 = vmatprep.mubr.f32.mxu0 0.0
  %197 = vmatmul.mubr.f32.gmra.mrb[0].mxu0 %v107
  %v198 = vpop.f32.mrb[0].mxu0
  %v199 = vadd.f32 %v100, %v198
  %v200 = vpop.f32.mrb[0].mxu0
  %201 = vmatprep.mubr.f32.mxu0 0.0
  %202 = vmatmul.mubr.f32.gmra.mrb[0].mxu0 %v110
  %v203 = vpop.f32.mrb[0].mxu0
  %v204 = vadd.f32 %v100, %v203
  %v205 = vpop.f32.mrb[0].mxu0
  %206 = vmatprep.mubr.f32.mxu0 0.0
  %207 = vmatmul.mubr.f32.gmra.mrb[0].mxu0 %v113
  %v208 = vpop.f32.mrb[0].mxu0
  %v209 = vadd.f32 %v100, %v208
  %v210 = vpop.f32.mrb[0].mxu0
  %211 = vmatprep.mubr.f32.mxu0 0.0
  %212 = vmatmul.mubr.f32.gmra.mrb[0].mxu0 %v116
  %v213 = vpop.f32.mrb[0].mxu0
  %v214 = vadd.f32 %v100, %v213
  %v215 = vpop.f32.mrb[0].mxu0
  %216 = vmatprep.mubr.f32.mxu0 0.0
  %217 = vmatmul.mubr.f32.gmra.mrb[0].mxu0 %v119
  %v218 = vpop.f32.mrb[0].mxu0
  %v219 = vadd.f32 %v100, %v218
  %v220 = vpop.f32.mrb[0].mxu0
  %221 = vmatprep.mubr.f32.mxu0 0.0
  %222 = vmatmul.mubr.f32.gmra.mrb[0].mxu0 %v122
  %v223 = vpop.f32.mrb[0].mxu0
  %v224 = vadd.f32 %v100, %v223
  %v225 = vpop.f32.mrb[0].mxu0
  %226 = vmatprep.mubr.f32.mxu0 0.0
  %227 = vmatmul.mubr.f32.gmra.mrb[0].mxu0 %v125
  %v228 = vpop.f32.mrb[0].mxu0
  %v229 = vadd.f32 %v100, %v228
  %v230 = vpop.f32.mrb[0].mxu0
  %231 = vdwg.mxu0
  %v232 = vmax.f32 %v194, 0.0
  %v233 = vmax.f32 %v199, 0.0
  %v234 = vmax.f32 %v204, 0.0
  %v235 = vmax.f32 %v209, 0.0
  %v236 = vmax.f32 %v214, 0.0
  %v237 = vmax.f32 %v219, 0.0
  %v238 = vmax.f32 %v224, 0.0
  %v239 = vmax.f32 %v229, 0.0
  %v240 = vld [vmem:[%s5] sm:$0x1]
  %v242 = vlaneseq
  %v243 = vshrl.u32 %v242, 7
  %v244 = vsub.s32 0, %v243
  %v245 = vrot.slane %v240, %v244
  %247 = vmatprep.subr.mxu0 0.0
  %248 = vmatpush1.msra.mxu0 %v39
  %249 = vmatprep.subr.mxu0 0.0
  %250 = vmatpush1.msra.mxu0 %v40
  %251 = vmatprep.subr.mxu0 0.0
  %252 = vmatpush1.msra.mxu0 %v41
  %253 = vmatprep.subr.mxu0 0.0
  %254 = vmatpush1.msra.mxu0 %v42
  %255 = vmatprep.subr.mxu0 0.0
  %256 = vmatpush1.msra.mxu0 %v43
  %257 = vmatprep.subr.mxu0 0.0
  %258 = vmatpush1.msra.mxu0 %v44
  %259 = vmatprep.subr.mxu0 0.0
  %260 = vmatpush1.msra.mxu0 %v45
  %261 = vmatprep.subr.mxu0 0.0
  %262 = vmatpush1.msra.mxu0 %v46
  %263 = vmatprep.subr.mxu0 0.0
  %264 = vmatpush1.msra.mxu0 %v47
  %265 = vmatprep.subr.mxu0 0.0
  %266 = vmatpush1.msra.mxu0 %v48
  %267 = vmatprep.subr.mxu0 0.0
  %268 = vmatpush1.msra.mxu0 %v49
  %269 = vmatprep.subr.mxu0 0.0
  %270 = vmatpush1.msra.mxu0 %v50
  %271 = vmatprep.subr.mxu0 0.0
  %272 = vmatpush1.msra.mxu0 %v51
  %273 = vmatprep.subr.mxu0 0.0
  %274 = vmatpush1.msra.mxu0 %v52
  %275 = vmatprep.subr.mxu0 0.0
  %276 = vmatpush1.msra.mxu0 %v53
  %277 = vmatprep.subr.mxu0 0.0
  %278 = vmatpush1.msra.mxu0 %v54
  %279 = vmatprep.subr.mxu0 0.0
  %280 = vmatpush1.msra.mxu0 0.0
  %281 = vmatprep.subr.mxu0 0.0
  %282 = vmatpush1.msra.mxu0 0.0
  %283 = vmatprep.subr.mxu0 0.0
  %284 = vmatpush1.msra.mxu0 0.0
  %285 = vmatprep.subr.mxu0 0.0
  %286 = vmatpush1.msra.mxu0 0.0
  %287 = vmatprep.subr.mxu0 0.0
  %288 = vmatpush1.msra.mxu0 0.0
  %289 = vmatprep.subr.mxu0 0.0
  %290 = vmatpush1.msra.mxu0 0.0
  %291 = vmatprep.subr.mxu0 0.0
  %292 = vmatpush1.msra.mxu0 0.0
  %293 = vmatprep.subr.mxu0 0.0
  %294 = vmatpush1.msra.mxu0 0.0
  %295 = vmatprep.subr.mxu0 0.0
  %296 = vmatpush1.msra.mxu0 0.0
  %297 = vmatprep.subr.mxu0 0.0
  %298 = vmatpush1.msra.mxu0 0.0
  %299 = vmatprep.subr.mxu0 0.0
  %300 = vmatpush1.msra.mxu0 0.0
  %301 = vmatprep.subr.mxu0 0.0
  %302 = vmatpush1.msra.mxu0 0.0
  %303 = vmatprep.subr.mxu0 0.0
  %304 = vmatpush1.msra.mxu0 0.0
  %305 = vmatprep.subr.mxu0 0.0
  %306 = vmatpush1.msra.mxu0 0.0
  %307 = vmatprep.subr.mxu0 0.0
  %308 = vmatpush1.msra.mxu0 0.0
  %309 = vmatprep.subr.mxu0 0.0
  %310 = vmatpush1.msra.mxu0 0.0
  %311 = vmatprep.mubr.f32.mxu0 0.0
  %312 = vmatmul.mubr.f32.gmra.mrb[0].mxu0 %v232
  %v313 = vpop.f32.mrb[0].mxu0
  %v314 = vadd.f32 %v245, %v313
  %v315 = vpop.f32.mrb[0].mxu0
  %316 = vmatprep.mubr.f32.mxu0 0.0
  %317 = vmatmul.mubr.f32.gmra.mrb[0].mxu0 %v233
  %v318 = vpop.f32.mrb[0].mxu0
  %v319 = vadd.f32 %v245, %v318
  %v320 = vpop.f32.mrb[0].mxu0
  %321 = vmatprep.mubr.f32.mxu0 0.0
  %322 = vmatmul.mubr.f32.gmra.mrb[0].mxu0 %v234
  %v323 = vpop.f32.mrb[0].mxu0
  %v324 = vadd.f32 %v245, %v323
  %v325 = vpop.f32.mrb[0].mxu0
  %326 = vmatprep.mubr.f32.mxu0 0.0
  %327 = vmatmul.mubr.f32.gmra.mrb[0].mxu0 %v235
  %v328 = vpop.f32.mrb[0].mxu0
  %v329 = vadd.f32 %v245, %v328
  %v330 = vpop.f32.mrb[0].mxu0
  %331 = vmatprep.mubr.f32.mxu0 0.0
  %332 = vmatmul.mubr.f32.gmra.mrb[0].mxu0 %v236
  %v333 = vpop.f32.mrb[0].mxu0
  %v334 = vadd.f32 %v245, %v333
  %v335 = vpop.f32.mrb[0].mxu0
  %336 = vmatprep.mubr.f32.mxu0 0.0
  %337 = vmatmul.mubr.f32.gmra.mrb[0].mxu0 %v237
  %v338 = vpop.f32.mrb[0].mxu0
  %v339 = vadd.f32 %v245, %v338
  %v340 = vpop.f32.mrb[0].mxu0
  %341 = vmatprep.mubr.f32.mxu0 0.0
  %342 = vmatmul.mubr.f32.gmra.mrb[0].mxu0 %v238
  %v343 = vpop.f32.mrb[0].mxu0
  %v344 = vadd.f32 %v245, %v343
  %v345 = vpop.f32.mrb[0].mxu0
  %346 = vmatprep.mubr.f32.mxu0 0.0
  %347 = vmatmul.mubr.f32.gmra.mrb[0].mxu0 %v239
  %v348 = vpop.f32.mrb[0].mxu0
  %v349 = vadd.f32 %v245, %v348
  %v350 = vpop.f32.mrb[0].mxu0
  %351 = vdwg.mxu0
  %v352 = vmax.f32 %v314, 0.0
  %v353 = vmax.f32 %v319, 0.0
  %v354 = vmax.f32 %v324, 0.0
  %v355 = vmax.f32 %v329, 0.0
  %v356 = vmax.f32 %v334, 0.0
  %v357 = vmax.f32 %v339, 0.0
  %v358 = vmax.f32 %v344, 0.0
  %v359 = vmax.f32 %v349, 0.0
  %v360 = vld [vmem:[%s7] sm:$0x1]
  %v362 = vlaneseq
  %v363 = vshrl.u32 %v362, 7
  %v364 = vsub.s32 0, %v363
  %v365 = vrot.slane %v360, %v364
  %367 = vmatprep.subr.mxu0 0.0
  %368 = vmatpush1.msra.mxu0 %v55
  %369 = vmatprep.subr.mxu0 0.0
  %370 = vmatpush1.msra.mxu0 %v56
  %371 = vmatprep.subr.mxu0 0.0
  %372 = vmatpush1.msra.mxu0 %v57
  %373 = vmatprep.subr.mxu0 0.0
  %374 = vmatpush1.msra.mxu0 %v58
  %375 = vmatprep.subr.mxu0 0.0
  %376 = vmatpush1.msra.mxu0 %v59
  %377 = vmatprep.subr.mxu0 0.0
  %378 = vmatpush1.msra.mxu0 %v60
  %379 = vmatprep.subr.mxu0 0.0
  %380 = vmatpush1.msra.mxu0 %v61
  %381 = vmatprep.subr.mxu0 0.0
  %382 = vmatpush1.msra.mxu0 %v62
  %383 = vmatprep.subr.mxu0 0.0
  %384 = vmatpush1.msra.mxu0 %v63
  %385 = vmatprep.subr.mxu0 0.0
  %386 = vmatpush1.msra.mxu0 %v64
  %387 = vmatprep.subr.mxu0 0.0
  %388 = vmatpush1.msra.mxu0 %v65
  %389 = vmatprep.subr.mxu0 0.0
  %390 = vmatpush1.msra.mxu0 %v66
  %391 = vmatprep.subr.mxu0 0.0
  %392 = vmatpush1.msra.mxu0 %v67
  %393 = vmatprep.subr.mxu0 0.0
  %394 = vmatpush1.msra.mxu0 %v68
  %395 = vmatprep.subr.mxu0 0.0
  %396 = vmatpush1.msra.mxu0 %v69
  %397 = vmatprep.subr.mxu0 0.0
  %398 = vmatpush1.msra.mxu0 %v70
  %399 = vmatprep.subr.mxu0 0.0
  %400 = vmatpush1.msra.mxu0 0.0
  %401 = vmatprep.subr.mxu0 0.0
  %402 = vmatpush1.msra.mxu0 0.0
  %403 = vmatprep.subr.mxu0 0.0
  %404 = vmatpush1.msra.mxu0 0.0
  %405 = vmatprep.subr.mxu0 0.0
  %406 = vmatpush1.msra.mxu0 0.0
  %407 = vmatprep.subr.mxu0 0.0
  %408 = vmatpush1.msra.mxu0 0.0
  %409 = vmatprep.subr.mxu0 0.0
  %410 = vmatpush1.msra.mxu0 0.0
  %411 = vmatprep.subr.mxu0 0.0
  %412 = vmatpush1.msra.mxu0 0.0
  %413 = vmatprep.subr.mxu0 0.0
  %414 = vmatpush1.msra.mxu0 0.0
  %415 = vmatprep.subr.mxu0 0.0
  %416 = vmatpush1.msra.mxu0 0.0
  %417 = vmatprep.subr.mxu0 0.0
  %418 = vmatpush1.msra.mxu0 0.0
  %419 = vmatprep.subr.mxu0 0.0
  %420 = vmatpush1.msra.mxu0 0.0
  %421 = vmatprep.subr.mxu0 0.0
  %422 = vmatpush1.msra.mxu0 0.0
  %423 = vmatprep.subr.mxu0 0.0
  %424 = vmatpush1.msra.mxu0 0.0
  %425 = vmatprep.subr.mxu0 0.0
  %426 = vmatpush1.msra.mxu0 0.0
  %427 = vmatprep.subr.mxu0 0.0
  %428 = vmatpush1.msra.mxu0 0.0
  %429 = vmatprep.subr.mxu0 0.0
  %430 = vmatpush1.msra.mxu0 0.0
  %431 = vmatprep.mubr.f32.mxu0 0.0
  %432 = vmatmul.mubr.f32.gmra.mrb[0].mxu0 %v352
  %v433 = vpop.f32.mrb[0].mxu0
  %v434 = vadd.f32 %v365, %v433
  %v435 = vpop.f32.mrb[0].mxu0
  %436 = vmatprep.mubr.f32.mxu0 0.0
  %437 = vmatmul.mubr.f32.gmra.mrb[0].mxu0 %v353
  %v438 = vpop.f32.mrb[0].mxu0
  %v439 = vadd.f32 %v365, %v438
  %v440 = vpop.f32.mrb[0].mxu0
  %441 = vmatprep.mubr.f32.mxu0 0.0
  %442 = vmatmul.mubr.f32.gmra.mrb[0].mxu0 %v354
  %v443 = vpop.f32.mrb[0].mxu0
  %v444 = vadd.f32 %v365, %v443
  %v445 = vpop.f32.mrb[0].mxu0
  %446 = vmatprep.mubr.f32.mxu0 0.0
  %447 = vmatmul.mubr.f32.gmra.mrb[0].mxu0 %v355
  %v448 = vpop.f32.mrb[0].mxu0
  %v449 = vadd.f32 %v365, %v448
  %v450 = vpop.f32.mrb[0].mxu0
  %451 = vmatprep.mubr.f32.mxu0 0.0
  %452 = vmatmul.mubr.f32.gmra.mrb[0].mxu0 %v356
  %v453 = vpop.f32.mrb[0].mxu0
  %v454 = vadd.f32 %v365, %v453
  %v455 = vpop.f32.mrb[0].mxu0
  %456 = vmatprep.mubr.f32.mxu0 0.0
  %457 = vmatmul.mubr.f32.gmra.mrb[0].mxu0 %v357
  %v458 = vpop.f32.mrb[0].mxu0
  %v459 = vadd.f32 %v365, %v458
  %v460 = vpop.f32.mrb[0].mxu0
  %461 = vmatprep.mubr.f32.mxu0 0.0
  %462 = vmatmul.mubr.f32.gmra.mrb[0].mxu0 %v358
  %v463 = vpop.f32.mrb[0].mxu0
  %v464 = vadd.f32 %v365, %v463
  %v465 = vpop.f32.mrb[0].mxu0
  %466 = vmatprep.mubr.f32.mxu0 0.0
  %467 = vmatmul.mubr.f32.gmra.mrb[0].mxu0 %v359
  %v468 = vpop.f32.mrb[0].mxu0
  %v469 = vadd.f32 %v365, %v468
  %v470 = vpop.f32.mrb[0].mxu0
  %471 = vdwg.mxu0
  %v472 = vld [vmem:[%s1] sm:$0xff]
  %v473 = vld [vmem:[%s1 + $0x8] sm:$0xff]
  %v474 = vld [vmem:[%s1 + $0x10] sm:$0xff]
  %v475 = vld [vmem:[%s1 + $0x18] sm:$0xff]
  %v476 = vld [vmem:[%s1 + $0x20] sm:$0xff]
  %v477 = vld [vmem:[%s1 + $0x28] sm:$0xff]
  %v478 = vld [vmem:[%s1 + $0x30] sm:$0xff]
  %v479 = vld [vmem:[%s1 + $0x38] sm:$0xff]
  %481 = vset.pattern.permute.xlu0 0
  %482 = vperm.xlu0 %481, %v472
  %v483 = vpop.permute.xlu0 %482
  %486 = vset.pattern.permute.xlu0 0
  %487 = vperm.xlu0 %486, %v473
  %v488 = vpop.permute.xlu0 %487
  %491 = vset.pattern.permute.xlu0 0
  %492 = vperm.xlu0 %491, %v474
  %v493 = vpop.permute.xlu0 %492
  %496 = vset.pattern.permute.xlu0 0
  %497 = vperm.xlu0 %496, %v475
  %v498 = vpop.permute.xlu0 %497
  %501 = vset.pattern.permute.xlu0 0
  %502 = vperm.xlu0 %501, %v476
  %v503 = vpop.permute.xlu0 %502
  %506 = vset.pattern.permute.xlu0 0
  %507 = vperm.xlu0 %506, %v477
  %v508 = vpop.permute.xlu0 %507
  %511 = vset.pattern.permute.xlu0 0
  %512 = vperm.xlu0 %511, %v478
  %v513 = vpop.permute.xlu0 %512
  %516 = vset.pattern.permute.xlu0 0
  %517 = vperm.xlu0 %516, %v479
  %v518 = vpop.permute.xlu0 %517
  %v520 = vmul.f32 %v434, %v483
  %v521 = vmul.f32 %v439, %v488
  %v522 = vmul.f32 %v444, %v493
  %v523 = vmul.f32 %v449, %v498
  %v524 = vmul.f32 %v454, %v503
  %v525 = vmul.f32 %v459, %v508
  %v526 = vmul.f32 %v464, %v513
  %v527 = vmul.f32 %v469, %v518
  %528 = vst [vmem:[%s10] sm:$0xff] %v520
  %529 = vst [vmem:[%s10 + $0x8] sm:$0xff] %v521
  %530 = vst [vmem:[%s10 + $0x10] sm:$0xff] %v522
  %531 = vst [vmem:[%s10 + $0x18] sm:$0xff] %v523
  %532 = vst [vmem:[%s10 + $0x20] sm:$0xff] %v524
  %533 = vst [vmem:[%s10 + $0x28] sm:$0xff] %v525
  %534 = vst [vmem:[%s10 + $0x30] sm:$0xff] %v526
  %535 = vst [vmem:[%s10 + $0x38] sm:$0xff] %v527
  %v536 = vmax.f32 %v520, 0.0
  %v537 = vmax.f32 %v521, 0.0
  %v538 = vmax.f32 %v522, 0.0
  %v539 = vmax.f32 %v523, 0.0
  %v540 = vmax.f32 %v524, 0.0
  %v541 = vmax.f32 %v525, 0.0
  %v542 = vmax.f32 %v526, 0.0
  %v543 = vmax.f32 %v527, 0.0
  %v544 = vld [vmem:[%s9] sm:$0x1]
  %v546 = vlaneseq
  %v547 = vshrl.u32 %v546, 7
  %v548 = vsub.s32 0, %v547
  %v549 = vrot.slane %v544, %v548
  %551 = vmatprep.subr.mxu0 0.0
  %552 = vmatpush1.msra.mxu0 %v71
  %553 = vmatprep.subr.mxu0 0.0
  %554 = vmatpush1.msra.mxu0 %v72
  %555 = vmatprep.subr.mxu0 0.0
  %556 = vmatpush1.msra.mxu0 %v73
  %557 = vmatprep.subr.mxu0 0.0
  %558 = vmatpush1.msra.mxu0 %v74
  %559 = vmatprep.subr.mxu0 0.0
  %560 = vmatpush1.msra.mxu0 %v75
  %561 = vmatprep.subr.mxu0 0.0
  %562 = vmatpush1.msra.mxu0 %v76
  %563 = vmatprep.subr.mxu0 0.0
  %564 = vmatpush1.msra.mxu0 %v77
  %565 = vmatprep.subr.mxu0 0.0
  %566 = vmatpush1.msra.mxu0 %v78
  %567 = vmatprep.subr.mxu0 0.0
  %568 = vmatpush1.msra.mxu0 %v79
  %569 = vmatprep.subr.mxu0 0.0
  %570 = vmatpush1.msra.mxu0 %v80
  %571 = vmatprep.subr.mxu0 0.0
  %572 = vmatpush1.msra.mxu0 %v81
  %573 = vmatprep.subr.mxu0 0.0
  %574 = vmatpush1.msra.mxu0 %v82
  %575 = vmatprep.subr.mxu0 0.0
  %576 = vmatpush1.msra.mxu0 %v83
  %577 = vmatprep.subr.mxu0 0.0
  %578 = vmatpush1.msra.mxu0 %v84
  %579 = vmatprep.subr.mxu0 0.0
  %580 = vmatpush1.msra.mxu0 %v85
  %581 = vmatprep.subr.mxu0 0.0
  %582 = vmatpush1.msra.mxu0 %v86
  %583 = vmatprep.subr.mxu0 0.0
  %584 = vmatpush1.msra.mxu0 0.0
  %585 = vmatprep.subr.mxu0 0.0
  %586 = vmatpush1.msra.mxu0 0.0
  %587 = vmatprep.subr.mxu0 0.0
  %588 = vmatpush1.msra.mxu0 0.0
  %589 = vmatprep.subr.mxu0 0.0
  %590 = vmatpush1.msra.mxu0 0.0
  %591 = vmatprep.subr.mxu0 0.0
  %592 = vmatpush1.msra.mxu0 0.0
  %593 = vmatprep.subr.mxu0 0.0
  %594 = vmatpush1.msra.mxu0 0.0
  %595 = vmatprep.subr.mxu0 0.0
  %596 = vmatpush1.msra.mxu0 0.0
  %597 = vmatprep.subr.mxu0 0.0
  %598 = vmatpush1.msra.mxu0 0.0
  %599 = vmatprep.subr.mxu0 0.0
  %600 = vmatpush1.msra.mxu0 0.0
  %601 = vmatprep.subr.mxu0 0.0
  %602 = vmatpush1.msra.mxu0 0.0
  %603 = vmatprep.subr.mxu0 0.0
  %604 = vmatpush1.msra.mxu0 0.0
  %605 = vmatprep.subr.mxu0 0.0
  %606 = vmatpush1.msra.mxu0 0.0
  %607 = vmatprep.subr.mxu0 0.0
  %608 = vmatpush1.msra.mxu0 0.0
  %609 = vmatprep.subr.mxu0 0.0
  %610 = vmatpush1.msra.mxu0 0.0
  %611 = vmatprep.subr.mxu0 0.0
  %612 = vmatpush1.msra.mxu0 0.0
  %613 = vmatprep.subr.mxu0 0.0
  %614 = vmatpush1.msra.mxu0 0.0
  %615 = vmatprep.mubr.f32.mxu0 0.0
  %616 = vmatmul.mubr.f32.gmra.mrb[0].mxu0 %v536
  %v617 = vpop.f32.mrb[0].mxu0
  %v618 = vadd.f32 %v549, %v617
  %v619 = vpop.f32.mrb[0].mxu0
  %620 = vmatprep.mubr.f32.mxu0 0.0
  %621 = vmatmul.mubr.f32.gmra.mrb[0].mxu0 %v537
  %v622 = vpop.f32.mrb[0].mxu0
  %v623 = vadd.f32 %v549, %v622
  %v624 = vpop.f32.mrb[0].mxu0
  %625 = vmatprep.mubr.f32.mxu0 0.0
  %626 = vmatmul.mubr.f32.gmra.mrb[0].mxu0 %v538
  %v627 = vpop.f32.mrb[0].mxu0
  %v628 = vadd.f32 %v549, %v627
  %v629 = vpop.f32.mrb[0].mxu0
  %630 = vmatprep.mubr.f32.mxu0 0.0
  %631 = vmatmul.mubr.f32.gmra.mrb[0].mxu0 %v539
  %v632 = vpop.f32.mrb[0].mxu0
  %v633 = vadd.f32 %v549, %v632
  %v634 = vpop.f32.mrb[0].mxu0
  %635 = vmatprep.mubr.f32.mxu0 0.0
  %636 = vmatmul.mubr.f32.gmra.mrb[0].mxu0 %v540
  %v637 = vpop.f32.mrb[0].mxu0
  %v638 = vadd.f32 %v549, %v637
  %v639 = vpop.f32.mrb[0].mxu0
  %640 = vmatprep.mubr.f32.mxu0 0.0
  %641 = vmatmul.mubr.f32.gmra.mrb[0].mxu0 %v541
  %v642 = vpop.f32.mrb[0].mxu0
  %v643 = vadd.f32 %v549, %v642
  %v644 = vpop.f32.mrb[0].mxu0
  %645 = vmatprep.mubr.f32.mxu0 0.0
  %646 = vmatmul.mubr.f32.gmra.mrb[0].mxu0 %v542
  %v647 = vpop.f32.mrb[0].mxu0
  %v648 = vadd.f32 %v549, %v647
  %v649 = vpop.f32.mrb[0].mxu0
  %650 = vmatprep.mubr.f32.mxu0 0.0
  %651 = vmatmul.mubr.f32.gmra.mrb[0].mxu0 %v543
  %v652 = vpop.f32.mrb[0].mxu0
  %v653 = vadd.f32 %v549, %v652
  %v654 = vpop.f32.mrb[0].mxu0
  %655 = vdwg.mxu0
  %656 = vst [vmem:[%s11] sm:$0xff] %v618
  %657 = vst [vmem:[%s11 + $0x8] sm:$0xff] %v623
  %658 = vst [vmem:[%s11 + $0x10] sm:$0xff] %v628
  %659 = vst [vmem:[%s11 + $0x18] sm:$0xff] %v633
  %660 = vst [vmem:[%s11 + $0x20] sm:$0xff] %v638
  %661 = vst [vmem:[%s11 + $0x28] sm:$0xff] %v643
  %662 = vst [vmem:[%s11 + $0x30] sm:$0xff] %v648
  %663 = vst [vmem:[%s11 + $0x38] sm:$0xff] %v653
  // Predicated region
  $region42: #{my_rnn_skip_nocat.3} parent=0 // pred_check
    _
  $region43: #{my_rnn_skip_nocat.3} parent=0 // pred_check_branch
    %665 = sbr.rel (0) target = $region45
  $region44: #{my_rnn_skip_nocat.3} parent=0 // pred_region
    _
  $region45: #{my_rnn_skip_nocat.3} parent=0 // pred_fallthru
    _
  // Predicated region
  $region46: #{my_rnn_skip_nocat.3} parent=0 // pred_check
    _
  $region47: #{my_rnn_skip_nocat.3} parent=0 // pred_check_branch
    %667 = sbr.rel (0) target = $region49
  $region48: #{my_rnn_skip_nocat.3} parent=0 // pred_region
    _
  $region49: #{my_rnn_skip_nocat.3} parent=0 // pred_fallthru
    _
  // Predicated region
  $region50: #{my_rnn_skip_nocat.3} parent=0 // pred_check
    _
  $region51: #{my_rnn_skip_nocat.3} parent=0 // pred_check_branch
    %669 = sbr.rel (0) target = $region53
  $region52: #{my_rnn_skip_nocat.3} parent=0 // pred_region
    _
  $region53: #{my_rnn_skip_nocat.3} parent=0 // pred_fallthru
    _
  // Predicated region
  $region54: #{my_rnn_skip_nocat.3} parent=0 // pred_check
    _
  $region55: #{my_rnn_skip_nocat.3} parent=0 // pred_check_branch
    %671 = sbr.rel (0) target = $region57
  $region56: #{my_rnn_skip_nocat.3} parent=0 // pred_region
    _
  $region57: #{my_rnn_skip_nocat.3} parent=0 // pred_fallthru
    _

// kernel: my_rnn_skip_nocat.4
$region0: #{my_rnn_skip_nocat.4}
  #allocation0 [shape = 'u32[]', space=smem, size = 0x4, offset = 0x4, fixed_abs, tag = 'smem constant byte address 0x4 - core index']
  #allocation1 [shape = 'u32[144,128]{1,0:T(1,128)}', space=vmem, size = 0x12000, scoped, tag = 'internal scratch']
  #allocation2 [shape = 'f32[8,128]{1,0:T(8,128)}', space=vmem, size = 0x1000, scoped, tag = 'scratch operand']
  %s0 = inlined_call_operand.vmem [shape: f32[8,8,128], index: 0, kind: input, shape index: {}]
  %s1 = inlined_call_operand.vmem [shape: f32[128,128], index: 1, kind: input, shape index: {}]
  %s2 = inlined_call_operand.vmem [shape: f32[8,8,128], index: 2, kind: output, shape index: {}]
  %s3 = sld [smem:[#allocation0]]
  $region22: #{my_rnn_skip_nocat.4} parent=0
    _
  %s5 = ssub.s32 1, %s3
  %s6 = scalar_select 0, %s5, %s3
  // Predicated region
  $region2: #{my_rnn_skip_nocat.4} parent=0 // pred_check
    _
  $region3: #{my_rnn_skip_nocat.4} parent=0 // pred_check_branch
    %8 = sbr.rel (0) target = $region5
  $region4: #{my_rnn_skip_nocat.4} parent=0 // pred_region
    _
  $region5: #{my_rnn_skip_nocat.4} parent=0 // pred_fallthru
    _
  // Predicated region
  $region6: #{my_rnn_skip_nocat.4} parent=0 // pred_check
    _
  $region7: #{my_rnn_skip_nocat.4} parent=0 // pred_check_branch
    %10 = sbr.rel (0) target = $region9
  $region8: #{my_rnn_skip_nocat.4} parent=0 // pred_region
    _
  $region9: #{my_rnn_skip_nocat.4} parent=0 // pred_fallthru
    _
  %p11 = scmp.eq.s32.totalorder 0, 0
  // Predicated region
  $region10: #{my_rnn_skip_nocat.4} parent=0 // pred_check
    %p12 = pneg %p11
  $region11: #{my_rnn_skip_nocat.4} parent=0 // pred_check_branch
    %14 = sbr.rel (%p12) target = $region13
  $region12: #{my_rnn_skip_nocat.4} parent=0 // pred_region
    %15 = vst [vmem:[#allocation2] sm:$0xff] 0.0
  $region13: #{my_rnn_skip_nocat.4} parent=0 // pred_fallthru
    _
  %v16 = vld [vmem:[#allocation2] sm:$0xff]
  %v17 = vld [vmem:[%s1] sm:$0xff]
  %v18 = vld [vmem:[%s1 + $0x8] sm:$0xff]
  %v19 = vld [vmem:[%s1 + $0x10] sm:$0xff]
  %v20 = vld [vmem:[%s1 + $0x18] sm:$0xff]
  %v21 = vld [vmem:[%s1 + $0x20] sm:$0xff]
  %v22 = vld [vmem:[%s1 + $0x28] sm:$0xff]
  %v23 = vld [vmem:[%s1 + $0x30] sm:$0xff]
  %v24 = vld [vmem:[%s1 + $0x38] sm:$0xff]
  %v25 = vld [vmem:[%s1 + $0x40] sm:$0xff]
  %v26 = vld [vmem:[%s1 + $0x48] sm:$0xff]
  %v27 = vld [vmem:[%s1 + $0x50] sm:$0xff]
  %v28 = vld [vmem:[%s1 + $0x58] sm:$0xff]
  %v29 = vld [vmem:[%s1 + $0x60] sm:$0xff]
  %v30 = vld [vmem:[%s1 + $0x68] sm:$0xff]
  %v31 = vld [vmem:[%s1 + $0x70] sm:$0xff]
  %v32 = vld [vmem:[%s1 + $0x78] sm:$0xff]
  %33 = vmatprep.subr.mxu0 0.0
  %34 = vmatpush1.msra.mxu0 %v17
  %35 = vmatprep.subr.mxu0 0.0
  %36 = vmatpush1.msra.mxu0 %v18
  %37 = vmatprep.subr.mxu0 0.0
  %38 = vmatpush1.msra.mxu0 %v19
  %39 = vmatprep.subr.mxu0 0.0
  %40 = vmatpush1.msra.mxu0 %v20
  %41 = vmatprep.subr.mxu0 0.0
  %42 = vmatpush1.msra.mxu0 %v21
  %43 = vmatprep.subr.mxu0 0.0
  %44 = vmatpush1.msra.mxu0 %v22
  %45 = vmatprep.subr.mxu0 0.0
  %46 = vmatpush1.msra.mxu0 %v23
  %47 = vmatprep.subr.mxu0 0.0
  %48 = vmatpush1.msra.mxu0 %v24
  %49 = vmatprep.subr.mxu0 0.0
  %50 = vmatpush1.msra.mxu0 %v25
  %51 = vmatprep.subr.mxu0 0.0
  %52 = vmatpush1.msra.mxu0 %v26
  %53 = vmatprep.subr.mxu0 0.0
  %54 = vmatpush1.msra.mxu0 %v27
  %55 = vmatprep.subr.mxu0 0.0
  %56 = vmatpush1.msra.mxu0 %v28
  %57 = vmatprep.subr.mxu0 0.0
  %58 = vmatpush1.msra.mxu0 %v29
  %59 = vmatprep.subr.mxu0 0.0
  %60 = vmatpush1.msra.mxu0 %v30
  %61 = vmatprep.subr.mxu0 0.0
  %62 = vmatpush1.msra.mxu0 %v31
  %63 = vmatprep.subr.mxu0 0.0
  %64 = vmatpush1.msra.mxu0 %v32
  %65 = vmatprep.subr.mxu0 0.0
  %66 = vmatpush1.msra.mxu0 0.0
  %67 = vmatprep.subr.mxu0 0.0
  %68 = vmatpush1.msra.mxu0 0.0
  %69 = vmatprep.subr.mxu0 0.0
  %70 = vmatpush1.msra.mxu0 0.0
  %71 = vmatprep.subr.mxu0 0.0
  %72 = vmatpush1.msra.mxu0 0.0
  %73 = vmatprep.subr.mxu0 0.0
  %74 = vmatpush1.msra.mxu0 0.0
  %75 = vmatprep.subr.mxu0 0.0
  %76 = vmatpush1.msra.mxu0 0.0
  %77 = vmatprep.subr.mxu0 0.0
  %78 = vmatpush1.msra.mxu0 0.0
  %79 = vmatprep.subr.mxu0 0.0
  %80 = vmatpush1.msra.mxu0 0.0
  %81 = vmatprep.subr.mxu0 0.0
  %82 = vmatpush1.msra.mxu0 0.0
  %83 = vmatprep.subr.mxu0 0.0
  %84 = vmatpush1.msra.mxu0 0.0
  %85 = vmatprep.subr.mxu0 0.0
  %86 = vmatpush1.msra.mxu0 0.0
  %87 = vmatprep.subr.mxu0 0.0
  %88 = vmatpush1.msra.mxu0 0.0
  %89 = vmatprep.subr.mxu0 0.0
  %90 = vmatpush1.msra.mxu0 0.0
  %91 = vmatprep.subr.mxu0 0.0
  %92 = vmatpush1.msra.mxu0 0.0
  %93 = vmatprep.subr.mxu0 0.0
  %94 = vmatpush1.msra.mxu0 0.0
  %95 = vmatprep.subr.mxu0 0.0
  %96 = vmatpush1.msra.mxu0 0.0
  %97 = vmatprep.mubr.f32.mxu0 0.0
  %98 = vmatmul.mubr.f32.gmra.mrb[0].mxu0 %v16
  %v99 = vpop.f32.mrb[0].mxu0
  %v100 = vadd.f32 0.0, %v99
  %v101 = vpop.f32.mrb[0].mxu0
  %102 = vdwg.mxu0
  %v103 = vld [vmem:[%s0] sm:$0xff]
  %v104 = vadd.f32 %v103, %v100
  %v105 = vtanh.pop %v104
  %106 = vst [vmem:[%s2] sm:$0xff] %v105
  %v107 = vld [vmem:[%s1] sm:$0xff]
  %v108 = vld [vmem:[%s1 + $0x8] sm:$0xff]
  %v109 = vld [vmem:[%s1 + $0x10] sm:$0xff]
  %v110 = vld [vmem:[%s1 + $0x18] sm:$0xff]
  %v111 = vld [vmem:[%s1 + $0x20] sm:$0xff]
  %v112 = vld [vmem:[%s1 + $0x28] sm:$0xff]
  %v113 = vld [vmem:[%s1 + $0x30] sm:$0xff]
  %v114 = vld [vmem:[%s1 + $0x38] sm:$0xff]
  %v115 = vld [vmem:[%s1 + $0x40] sm:$0xff]
  %v116 = vld [vmem:[%s1 + $0x48] sm:$0xff]
  %v117 = vld [vmem:[%s1 + $0x50] sm:$0xff]
  %v118 = vld [vmem:[%s1 + $0x58] sm:$0xff]
  %v119 = vld [vmem:[%s1 + $0x60] sm:$0xff]
  %v120 = vld [vmem:[%s1 + $0x68] sm:$0xff]
  %v121 = vld [vmem:[%s1 + $0x70] sm:$0xff]
  %v122 = vld [vmem:[%s1 + $0x78] sm:$0xff]
  %123 = vmatprep.subr.mxu0 0.0
  %124 = vmatpush1.msra.mxu0 %v107
  %125 = vmatprep.subr.mxu0 0.0
  %126 = vmatpush1.msra.mxu0 %v108
  %127 = vmatprep.subr.mxu0 0.0
  %128 = vmatpush1.msra.mxu0 %v109
  %129 = vmatprep.subr.mxu0 0.0
  %130 = vmatpush1.msra.mxu0 %v110
  %131 = vmatprep.subr.mxu0 0.0
  %132 = vmatpush1.msra.mxu0 %v111
  %133 = vmatprep.subr.mxu0 0.0
  %134 = vmatpush1.msra.mxu0 %v112
  %135 = vmatprep.subr.mxu0 0.0
  %136 = vmatpush1.msra.mxu0 %v113
  %137 = vmatprep.subr.mxu0 0.0
  %138 = vmatpush1.msra.mxu0 %v114
  %139 = vmatprep.subr.mxu0 0.0
  %140 = vmatpush1.msra.mxu0 %v115
  %141 = vmatprep.subr.mxu0 0.0
  %142 = vmatpush1.msra.mxu0 %v116
  %143 = vmatprep.subr.mxu0 0.0
  %144 = vmatpush1.msra.mxu0 %v117
  %145 = vmatprep.subr.mxu0 0.0
  %146 = vmatpush1.msra.mxu0 %v118
  %147 = vmatprep.subr.mxu0 0.0
  %148 = vmatpush1.msra.mxu0 %v119
  %149 = vmatprep.subr.mxu0 0.0
  %150 = vmatpush1.msra.mxu0 %v120
  %151 = vmatprep.subr.mxu0 0.0
  %152 = vmatpush1.msra.mxu0 %v121
  %153 = vmatprep.subr.mxu0 0.0
  %154 = vmatpush1.msra.mxu0 %v122
  %155 = vmatprep.subr.mxu0 0.0
  %156 = vmatpush1.msra.mxu0 0.0
  %157 = vmatprep.subr.mxu0 0.0
  %158 = vmatpush1.msra.mxu0 0.0
  %159 = vmatprep.subr.mxu0 0.0
  %160 = vmatpush1.msra.mxu0 0.0
  %161 = vmatprep.subr.mxu0 0.0
  %162 = vmatpush1.msra.mxu0 0.0
  %163 = vmatprep.subr.mxu0 0.0
  %164 = vmatpush1.msra.mxu0 0.0
  %165 = vmatprep.subr.mxu0 0.0
  %166 = vmatpush1.msra.mxu0 0.0
  %167 = vmatprep.subr.mxu0 0.0
  %168 = vmatpush1.msra.mxu0 0.0
  %169 = vmatprep.subr.mxu0 0.0
  %170 = vmatpush1.msra.mxu0 0.0
  %171 = vmatprep.subr.mxu0 0.0
  %172 = vmatpush1.msra.mxu0 0.0
  %173 = vmatprep.subr.mxu0 0.0
  %174 = vmatpush1.msra.mxu0 0.0
  %175 = vmatprep.subr.mxu0 0.0
  %176 = vmatpush1.msra.mxu0 0.0
  %177 = vmatprep.subr.mxu0 0.0
  %178 = vmatpush1.msra.mxu0 0.0
  %179 = vmatprep.subr.mxu0 0.0
  %180 = vmatpush1.msra.mxu0 0.0
  %181 = vmatprep.subr.mxu0 0.0
  %182 = vmatpush1.msra.mxu0 0.0
  %183 = vmatprep.subr.mxu0 0.0
  %184 = vmatpush1.msra.mxu0 0.0
  %185 = vmatprep.subr.mxu0 0.0
  %186 = vmatpush1.msra.mxu0 0.0
  %187 = vmatprep.mubr.f32.mxu0 0.0
  %188 = vmatmul.mubr.f32.gmra.mrb[0].mxu0 %v105
  %v189 = vpop.f32.mrb[0].mxu0
  %v190 = vadd.f32 0.0, %v189
  %v191 = vpop.f32.mrb[0].mxu0
  %192 = vdwg.mxu0
  %s193 = scalar_lea.vmem %s0, 8
  %v194 = vld [vmem:[%s193] sm:$0xff]
  %v195 = vadd.f32 %v194, %v190
  %v196 = vtanh.pop %v195
  %s197 = scalar_lea.vmem %s2, 8
  %198 = vst [vmem:[%s197] sm:$0xff] %v196
  %v199 = vld [vmem:[%s1] sm:$0xff]
  %v200 = vld [vmem:[%s1 + $0x8] sm:$0xff]
  %v201 = vld [vmem:[%s1 + $0x10] sm:$0xff]
  %v202 = vld [vmem:[%s1 + $0x18] sm:$0xff]
  %v203 = vld [vmem:[%s1 + $0x20] sm:$0xff]
  %v204 = vld [vmem:[%s1 + $0x28] sm:$0xff]
  %v205 = vld [vmem:[%s1 + $0x30] sm:$0xff]
  %v206 = vld [vmem:[%s1 + $0x38] sm:$0xff]
  %v207 = vld [vmem:[%s1 + $0x40] sm:$0xff]
  %v208 = vld [vmem:[%s1 + $0x48] sm:$0xff]
  %v209 = vld [vmem:[%s1 + $0x50] sm:$0xff]
  %v210 = vld [vmem:[%s1 + $0x58] sm:$0xff]
  %v211 = vld [vmem:[%s1 + $0x60] sm:$0xff]
  %v212 = vld [vmem:[%s1 + $0x68] sm:$0xff]
  %v213 = vld [vmem:[%s1 + $0x70] sm:$0xff]
  %v214 = vld [vmem:[%s1 + $0x78] sm:$0xff]
  %215 = vmatprep.subr.mxu0 0.0
  %216 = vmatpush1.msra.mxu0 %v199
  %217 = vmatprep.subr.mxu0 0.0
  %218 = vmatpush1.msra.mxu0 %v200
  %219 = vmatprep.subr.mxu0 0.0
  %220 = vmatpush1.msra.mxu0 %v201
  %221 = vmatprep.subr.mxu0 0.0
  %222 = vmatpush1.msra.mxu0 %v202
  %223 = vmatprep.subr.mxu0 0.0
  %224 = vmatpush1.msra.mxu0 %v203
  %225 = vmatprep.subr.mxu0 0.0
  %226 = vmatpush1.msra.mxu0 %v204
  %227 = vmatprep.subr.mxu0 0.0
  %228 = vmatpush1.msra.mxu0 %v205
  %229 = vmatprep.subr.mxu0 0.0
  %230 = vmatpush1.msra.mxu0 %v206
  %231 = vmatprep.subr.mxu0 0.0
  %232 = vmatpush1.msra.mxu0 %v207
  %233 = vmatprep.subr.mxu0 0.0
  %234 = vmatpush1.msra.mxu0 %v208
  %235 = vmatprep.subr.mxu0 0.0
  %236 = vmatpush1.msra.mxu0 %v209
  %237 = vmatprep.subr.mxu0 0.0
  %238 = vmatpush1.msra.mxu0 %v210
  %239 = vmatprep.subr.mxu0 0.0
  %240 = vmatpush1.msra.mxu0 %v211
  %241 = vmatprep.subr.mxu0 0.0
  %242 = vmatpush1.msra.mxu0 %v212
  %243 = vmatprep.subr.mxu0 0.0
  %244 = vmatpush1.msra.mxu0 %v213
  %245 = vmatprep.subr.mxu0 0.0
  %246 = vmatpush1.msra.mxu0 %v214
  %247 = vmatprep.subr.mxu0 0.0
  %248 = vmatpush1.msra.mxu0 0.0
  %249 = vmatprep.subr.mxu0 0.0
  %250 = vmatpush1.msra.mxu0 0.0
  %251 = vmatprep.subr.mxu0 0.0
  %252 = vmatpush1.msra.mxu0 0.0
  %253 = vmatprep.subr.mxu0 0.0
  %254 = vmatpush1.msra.mxu0 0.0
  %255 = vmatprep.subr.mxu0 0.0
  %256 = vmatpush1.msra.mxu0 0.0
  %257 = vmatprep.subr.mxu0 0.0
  %258 = vmatpush1.msra.mxu0 0.0
  %259 = vmatprep.subr.mxu0 0.0
  %260 = vmatpush1.msra.mxu0 0.0
  %261 = vmatprep.subr.mxu0 0.0
  %262 = vmatpush1.msra.mxu0 0.0
  %263 = vmatprep.subr.mxu0 0.0
  %264 = vmatpush1.msra.mxu0 0.0
  %265 = vmatprep.subr.mxu0 0.0
  %266 = vmatpush1.msra.mxu0 0.0
  %267 = vmatprep.subr.mxu0 0.0
  %268 = vmatpush1.msra.mxu0 0.0
  %269 = vmatprep.subr.mxu0 0.0
  %270 = vmatpush1.msra.mxu0 0.0
  %271 = vmatprep.subr.mxu0 0.0
  %272 = vmatpush1.msra.mxu0 0.0
  %273 = vmatprep.subr.mxu0 0.0
  %274 = vmatpush1.msra.mxu0 0.0
  %275 = vmatprep.subr.mxu0 0.0
  %276 = vmatpush1.msra.mxu0 0.0
  %277 = vmatprep.subr.mxu0 0.0
  %278 = vmatpush1.msra.mxu0 0.0
  %279 = vmatprep.mubr.f32.mxu0 0.0
  %280 = vmatmul.mubr.f32.gmra.mrb[0].mxu0 %v196
  %v281 = vpop.f32.mrb[0].mxu0
  %v282 = vadd.f32 0.0, %v281
  %v283 = vpop.f32.mrb[0].mxu0
  %284 = vdwg.mxu0
  %s285 = scalar_lea.vmem %s0, 16
  %v286 = vld [vmem:[%s285] sm:$0xff]
  %v287 = vadd.f32 %v286, %v282
  %v288 = vtanh.pop %v287
  %s289 = scalar_lea.vmem %s2, 16
  %290 = vst [vmem:[%s289] sm:$0xff] %v288
  %v291 = vld [vmem:[%s1] sm:$0xff]
  %v292 = vld [vmem:[%s1 + $0x8] sm:$0xff]
  %v293 = vld [vmem:[%s1 + $0x10] sm:$0xff]
  %v294 = vld [vmem:[%s1 + $0x18] sm:$0xff]
  %v295 = vld [vmem:[%s1 + $0x20] sm:$0xff]
  %v296 = vld [vmem:[%s1 + $0x28] sm:$0xff]
  %v297 = vld [vmem:[%s1 + $0x30] sm:$0xff]
  %v298 = vld [vmem:[%s1 + $0x38] sm:$0xff]
  %v299 = vld [vmem:[%s1 + $0x40] sm:$0xff]
  %v300 = vld [vmem:[%s1 + $0x48] sm:$0xff]
  %v301 = vld [vmem:[%s1 + $0x50] sm:$0xff]
  %v302 = vld [vmem:[%s1 + $0x58] sm:$0xff]
  %v303 = vld [vmem:[%s1 + $0x60] sm:$0xff]
  %v304 = vld [vmem:[%s1 + $0x68] sm:$0xff]
  %v305 = vld [vmem:[%s1 + $0x70] sm:$0xff]
  %v306 = vld [vmem:[%s1 + $0x78] sm:$0xff]
  %307 = vmatprep.subr.mxu0 0.0
  %308 = vmatpush1.msra.mxu0 %v291
  %309 = vmatprep.subr.mxu0 0.0
  %310 = vmatpush1.msra.mxu0 %v292
  %311 = vmatprep.subr.mxu0 0.0
  %312 = vmatpush1.msra.mxu0 %v293
  %313 = vmatprep.subr.mxu0 0.0
  %314 = vmatpush1.msra.mxu0 %v294
  %315 = vmatprep.subr.mxu0 0.0
  %316 = vmatpush1.msra.mxu0 %v295
  %317 = vmatprep.subr.mxu0 0.0
  %318 = vmatpush1.msra.mxu0 %v296
  %319 = vmatprep.subr.mxu0 0.0
  %320 = vmatpush1.msra.mxu0 %v297
  %321 = vmatprep.subr.mxu0 0.0
  %322 = vmatpush1.msra.mxu0 %v298
  %323 = vmatprep.subr.mxu0 0.0
  %324 = vmatpush1.msra.mxu0 %v299
  %325 = vmatprep.subr.mxu0 0.0
  %326 = vmatpush1.msra.mxu0 %v300
  %327 = vmatprep.subr.mxu0 0.0
  %328 = vmatpush1.msra.mxu0 %v301
  %329 = vmatprep.subr.mxu0 0.0
  %330 = vmatpush1.msra.mxu0 %v302
  %331 = vmatprep.subr.mxu0 0.0
  %332 = vmatpush1.msra.mxu0 %v303
  %333 = vmatprep.subr.mxu0 0.0
  %334 = vmatpush1.msra.mxu0 %v304
  %335 = vmatprep.subr.mxu0 0.0
  %336 = vmatpush1.msra.mxu0 %v305
  %337 = vmatprep.subr.mxu0 0.0
  %338 = vmatpush1.msra.mxu0 %v306
  %339 = vmatprep.subr.mxu0 0.0
  %340 = vmatpush1.msra.mxu0 0.0
  %341 = vmatprep.subr.mxu0 0.0
  %342 = vmatpush1.msra.mxu0 0.0
  %343 = vmatprep.subr.mxu0 0.0
  %344 = vmatpush1.msra.mxu0 0.0
  %345 = vmatprep.subr.mxu0 0.0
  %346 = vmatpush1.msra.mxu0 0.0
  %347 = vmatprep.subr.mxu0 0.0
  %348 = vmatpush1.msra.mxu0 0.0
  %349 = vmatprep.subr.mxu0 0.0
  %350 = vmatpush1.msra.mxu0 0.0
  %351 = vmatprep.subr.mxu0 0.0
  %352 = vmatpush1.msra.mxu0 0.0
  %353 = vmatprep.subr.mxu0 0.0
  %354 = vmatpush1.msra.mxu0 0.0
  %355 = vmatprep.subr.mxu0 0.0
  %356 = vmatpush1.msra.mxu0 0.0
  %357 = vmatprep.subr.mxu0 0.0
  %358 = vmatpush1.msra.mxu0 0.0
  %359 = vmatprep.subr.mxu0 0.0
  %360 = vmatpush1.msra.mxu0 0.0
  %361 = vmatprep.subr.mxu0 0.0
  %362 = vmatpush1.msra.mxu0 0.0
  %363 = vmatprep.subr.mxu0 0.0
  %364 = vmatpush1.msra.mxu0 0.0
  %365 = vmatprep.subr.mxu0 0.0
  %366 = vmatpush1.msra.mxu0 0.0
  %367 = vmatprep.subr.mxu0 0.0
  %368 = vmatpush1.msra.mxu0 0.0
  %369 = vmatprep.subr.mxu0 0.0
  %370 = vmatpush1.msra.mxu0 0.0
  %371 = vmatprep.mubr.f32.mxu0 0.0
  %372 = vmatmul.mubr.f32.gmra.mrb[0].mxu0 %v288
  %v373 = vpop.f32.mrb[0].mxu0
  %v374 = vadd.f32 0.0, %v373
  %v375 = vpop.f32.mrb[0].mxu0
  %376 = vdwg.mxu0
  %s377 = scalar_lea.vmem %s0, 24
  %v378 = vld [vmem:[%s377] sm:$0xff]
  %v379 = vadd.f32 %v378, %v374
  %v380 = vtanh.pop %v379
  %s381 = scalar_lea.vmem %s2, 24
  %382 = vst [vmem:[%s381] sm:$0xff] %v380
  %v383 = vld [vmem:[%s1] sm:$0xff]
  %v384 = vld [vmem:[%s1 + $0x8] sm:$0xff]
  %v385 = vld [vmem:[%s1 + $0x10] sm:$0xff]
  %v386 = vld [vmem:[%s1 + $0x18] sm:$0xff]
  %v387 = vld [vmem:[%s1 + $0x20] sm:$0xff]
  %v388 = vld [vmem:[%s1 + $0x28] sm:$0xff]
  %v389 = vld [vmem:[%s1 + $0x30] sm:$0xff]
  %v390 = vld [vmem:[%s1 + $0x38] sm:$0xff]
  %v391 = vld [vmem:[%s1 + $0x40] sm:$0xff]
  %v392 = vld [vmem:[%s1 + $0x48] sm:$0xff]
  %v393 = vld [vmem:[%s1 + $0x50] sm:$0xff]
  %v394 = vld [vmem:[%s1 + $0x58] sm:$0xff]
  %v395 = vld [vmem:[%s1 + $0x60] sm:$0xff]
  %v396 = vld [vmem:[%s1 + $0x68] sm:$0xff]
  %v397 = vld [vmem:[%s1 + $0x70] sm:$0xff]
  %v398 = vld [vmem:[%s1 + $0x78] sm:$0xff]
  %399 = vmatprep.subr.mxu0 0.0
  %400 = vmatpush1.msra.mxu0 %v383
  %401 = vmatprep.subr.mxu0 0.0
  %402 = vmatpush1.msra.mxu0 %v384
  %403 = vmatprep.subr.mxu0 0.0
  %404 = vmatpush1.msra.mxu0 %v385
  %405 = vmatprep.subr.mxu0 0.0
  %406 = vmatpush1.msra.mxu0 %v386
  %407 = vmatprep.subr.mxu0 0.0
  %408 = vmatpush1.msra.mxu0 %v387
  %409 = vmatprep.subr.mxu0 0.0
  %410 = vmatpush1.msra.mxu0 %v388
  %411 = vmatprep.subr.mxu0 0.0
  %412 = vmatpush1.msra.mxu0 %v389
  %413 = vmatprep.subr.mxu0 0.0
  %414 = vmatpush1.msra.mxu0 %v390
  %415 = vmatprep.subr.mxu0 0.0
  %416 = vmatpush1.msra.mxu0 %v391
  %417 = vmatprep.subr.mxu0 0.0
  %418 = vmatpush1.msra.mxu0 %v392
  %419 = vmatprep.subr.mxu0 0.0
  %420 = vmatpush1.msra.mxu0 %v393
  %421 = vmatprep.subr.mxu0 0.0
  %422 = vmatpush1.msra.mxu0 %v394
  %423 = vmatprep.subr.mxu0 0.0
  %424 = vmatpush1.msra.mxu0 %v395
  %425 = vmatprep.subr.mxu0 0.0
  %426 = vmatpush1.msra.mxu0 %v396
  %427 = vmatprep.subr.mxu0 0.0
  %428 = vmatpush1.msra.mxu0 %v397
  %429 = vmatprep.subr.mxu0 0.0
  %430 = vmatpush1.msra.mxu0 %v398
  %431 = vmatprep.subr.mxu0 0.0
  %432 = vmatpush1.msra.mxu0 0.0
  %433 = vmatprep.subr.mxu0 0.0
  %434 = vmatpush1.msra.mxu0 0.0
  %435 = vmatprep.subr.mxu0 0.0
  %436 = vmatpush1.msra.mxu0 0.0
  %437 = vmatprep.subr.mxu0 0.0
  %438 = vmatpush1.msra.mxu0 0.0
  %439 = vmatprep.subr.mxu0 0.0
  %440 = vmatpush1.msra.mxu0 0.0
  %441 = vmatprep.subr.mxu0 0.0
  %442 = vmatpush1.msra.mxu0 0.0
  %443 = vmatprep.subr.mxu0 0.0
  %444 = vmatpush1.msra.mxu0 0.0
  %445 = vmatprep.subr.mxu0 0.0
  %446 = vmatpush1.msra.mxu0 0.0
  %447 = vmatprep.subr.mxu0 0.0
  %448 = vmatpush1.msra.mxu0 0.0
  %449 = vmatprep.subr.mxu0 0.0
  %450 = vmatpush1.msra.mxu0 0.0
  %451 = vmatprep.subr.mxu0 0.0
  %452 = vmatpush1.msra.mxu0 0.0
  %453 = vmatprep.subr.mxu0 0.0
  %454 = vmatpush1.msra.mxu0 0.0
  %455 = vmatprep.subr.mxu0 0.0
  %456 = vmatpush1.msra.mxu0 0.0
  %457 = vmatprep.subr.mxu0 0.0
  %458 = vmatpush1.msra.mxu0 0.0
  %459 = vmatprep.subr.mxu0 0.0
  %460 = vmatpush1.msra.mxu0 0.0
  %461 = vmatprep.subr.mxu0 0.0
  %462 = vmatpush1.msra.mxu0 0.0
  %463 = vmatprep.mubr.f32.mxu0 0.0
  %464 = vmatmul.mubr.f32.gmra.mrb[0].mxu0 %v380
  %v465 = vpop.f32.mrb[0].mxu0
  %v466 = vadd.f32 0.0, %v465
  %v467 = vpop.f32.mrb[0].mxu0
  %468 = vdwg.mxu0
  %s469 = scalar_lea.vmem %s0, 32
  %v470 = vld [vmem:[%s469] sm:$0xff]
  %v471 = vadd.f32 %v470, %v466
  %v472 = vtanh.pop %v471
  %s473 = scalar_lea.vmem %s2, 32
  %474 = vst [vmem:[%s473] sm:$0xff] %v472
  %v475 = vld [vmem:[%s1] sm:$0xff]
  %v476 = vld [vmem:[%s1 + $0x8] sm:$0xff]
  %v477 = vld [vmem:[%s1 + $0x10] sm:$0xff]
  %v478 = vld [vmem:[%s1 + $0x18] sm:$0xff]
  %v479 = vld [vmem:[%s1 + $0x20] sm:$0xff]
  %v480 = vld [vmem:[%s1 + $0x28] sm:$0xff]
  %v481 = vld [vmem:[%s1 + $0x30] sm:$0xff]
  %v482 = vld [vmem:[%s1 + $0x38] sm:$0xff]
  %v483 = vld [vmem:[%s1 + $0x40] sm:$0xff]
  %v484 = vld [vmem:[%s1 + $0x48] sm:$0xff]
  %v485 = vld [vmem:[%s1 + $0x50] sm:$0xff]
  %v486 = vld [vmem:[%s1 + $0x58] sm:$0xff]
  %v487 = vld [vmem:[%s1 + $0x60] sm:$0xff]
  %v488 = vld [vmem:[%s1 + $0x68] sm:$0xff]
  %v489 = vld [vmem:[%s1 + $0x70] sm:$0xff]
  %v490 = vld [vmem:[%s1 + $0x78] sm:$0xff]
  %491 = vmatprep.subr.mxu0 0.0
  %492 = vmatpush1.msra.mxu0 %v475
  %493 = vmatprep.subr.mxu0 0.0
  %494 = vmatpush1.msra.mxu0 %v476
  %495 = vmatprep.subr.mxu0 0.0
  %496 = vmatpush1.msra.mxu0 %v477
  %497 = vmatprep.subr.mxu0 0.0
  %498 = vmatpush1.msra.mxu0 %v478
  %499 = vmatprep.subr.mxu0 0.0
  %500 = vmatpush1.msra.mxu0 %v479
  %501 = vmatprep.subr.mxu0 0.0
  %502 = vmatpush1.msra.mxu0 %v480
  %503 = vmatprep.subr.mxu0 0.0
  %504 = vmatpush1.msra.mxu0 %v481
  %505 = vmatprep.subr.mxu0 0.0
  %506 = vmatpush1.msra.mxu0 %v482
  %507 = vmatprep.subr.mxu0 0.0
  %508 = vmatpush1.msra.mxu0 %v483
  %509 = vmatprep.subr.mxu0 0.0
  %510 = vmatpush1.msra.mxu0 %v484
  %511 = vmatprep.subr.mxu0 0.0
  %512 = vmatpush1.msra.mxu0 %v485
  %513 = vmatprep.subr.mxu0 0.0
  %514 = vmatpush1.msra.mxu0 %v486
  %515 = vmatprep.subr.mxu0 0.0
  %516 = vmatpush1.msra.mxu0 %v487
  %517 = vmatprep.subr.mxu0 0.0
  %518 = vmatpush1.msra.mxu0 %v488
  %519 = vmatprep.subr.mxu0 0.0
  %520 = vmatpush1.msra.mxu0 %v489
  %521 = vmatprep.subr.mxu0 0.0
  %522 = vmatpush1.msra.mxu0 %v490
  %523 = vmatprep.subr.mxu0 0.0
  %524 = vmatpush1.msra.mxu0 0.0
  %525 = vmatprep.subr.mxu0 0.0
  %526 = vmatpush1.msra.mxu0 0.0
  %527 = vmatprep.subr.mxu0 0.0
  %528 = vmatpush1.msra.mxu0 0.0
  %529 = vmatprep.subr.mxu0 0.0
  %530 = vmatpush1.msra.mxu0 0.0
  %531 = vmatprep.subr.mxu0 0.0
  %532 = vmatpush1.msra.mxu0 0.0
  %533 = vmatprep.subr.mxu0 0.0
  %534 = vmatpush1.msra.mxu0 0.0
  %535 = vmatprep.subr.mxu0 0.0
  %536 = vmatpush1.msra.mxu0 0.0
  %537 = vmatprep.subr.mxu0 0.0
  %538 = vmatpush1.msra.mxu0 0.0
  %539 = vmatprep.subr.mxu0 0.0
  %540 = vmatpush1.msra.mxu0 0.0
  %541 = vmatprep.subr.mxu0 0.0
  %542 = vmatpush1.msra.mxu0 0.0
  %543 = vmatprep.subr.mxu0 0.0
  %544 = vmatpush1.msra.mxu0 0.0
  %545 = vmatprep.subr.mxu0 0.0
  %546 = vmatpush1.msra.mxu0 0.0
  %547 = vmatprep.subr.mxu0 0.0
  %548 = vmatpush1.msra.mxu0 0.0
  %549 = vmatprep.subr.mxu0 0.0
  %550 = vmatpush1.msra.mxu0 0.0
  %551 = vmatprep.subr.mxu0 0.0
  %552 = vmatpush1.msra.mxu0 0.0
  %553 = vmatprep.subr.mxu0 0.0
  %554 = vmatpush1.msra.mxu0 0.0
  %555 = vmatprep.mubr.f32.mxu0 0.0
  %556 = vmatmul.mubr.f32.gmra.mrb[0].mxu0 %v472
  %v557 = vpop.f32.mrb[0].mxu0
  %v558 = vadd.f32 0.0, %v557
  %v559 = vpop.f32.mrb[0].mxu0
  %560 = vdwg.mxu0
  %s561 = scalar_lea.vmem %s0, 40
  %v562 = vld [vmem:[%s561] sm:$0xff]
  %v563 = vadd.f32 %v562, %v558
  %v564 = vtanh.pop %v563
  %s565 = scalar_lea.vmem %s2, 40
  %566 = vst [vmem:[%s565] sm:$0xff] %v564
  %v567 = vld [vmem:[%s1] sm:$0xff]
  %v568 = vld [vmem:[%s1 + $0x8] sm:$0xff]
  %v569 = vld [vmem:[%s1 + $0x10] sm:$0xff]
  %v570 = vld [vmem:[%s1 + $0x18] sm:$0xff]
  %v571 = vld [vmem:[%s1 + $0x20] sm:$0xff]
  %v572 = vld [vmem:[%s1 + $0x28] sm:$0xff]
  %v573 = vld [vmem:[%s1 + $0x30] sm:$0xff]
  %v574 = vld [vmem:[%s1 + $0x38] sm:$0xff]
  %v575 = vld [vmem:[%s1 + $0x40] sm:$0xff]
  %v576 = vld [vmem:[%s1 + $0x48] sm:$0xff]
  %v577 = vld [vmem:[%s1 + $0x50] sm:$0xff]
  %v578 = vld [vmem:[%s1 + $0x58] sm:$0xff]
  %v579 = vld [vmem:[%s1 + $0x60] sm:$0xff]
  %v580 = vld [vmem:[%s1 + $0x68] sm:$0xff]
  %v581 = vld [vmem:[%s1 + $0x70] sm:$0xff]
  %v582 = vld [vmem:[%s1 + $0x78] sm:$0xff]
  %583 = vmatprep.subr.mxu0 0.0
  %584 = vmatpush1.msra.mxu0 %v567
  %585 = vmatprep.subr.mxu0 0.0
  %586 = vmatpush1.msra.mxu0 %v568
  %587 = vmatprep.subr.mxu0 0.0
  %588 = vmatpush1.msra.mxu0 %v569
  %589 = vmatprep.subr.mxu0 0.0
  %590 = vmatpush1.msra.mxu0 %v570
  %591 = vmatprep.subr.mxu0 0.0
  %592 = vmatpush1.msra.mxu0 %v571
  %593 = vmatprep.subr.mxu0 0.0
  %594 = vmatpush1.msra.mxu0 %v572
  %595 = vmatprep.subr.mxu0 0.0
  %596 = vmatpush1.msra.mxu0 %v573
  %597 = vmatprep.subr.mxu0 0.0
  %598 = vmatpush1.msra.mxu0 %v574
  %599 = vmatprep.subr.mxu0 0.0
  %600 = vmatpush1.msra.mxu0 %v575
  %601 = vmatprep.subr.mxu0 0.0
  %602 = vmatpush1.msra.mxu0 %v576
  %603 = vmatprep.subr.mxu0 0.0
  %604 = vmatpush1.msra.mxu0 %v577
  %605 = vmatprep.subr.mxu0 0.0
  %606 = vmatpush1.msra.mxu0 %v578
  %607 = vmatprep.subr.mxu0 0.0
  %608 = vmatpush1.msra.mxu0 %v579
  %609 = vmatprep.subr.mxu0 0.0
  %610 = vmatpush1.msra.mxu0 %v580
  %611 = vmatprep.subr.mxu0 0.0
  %612 = vmatpush1.msra.mxu0 %v581
  %613 = vmatprep.subr.mxu0 0.0
  %614 = vmatpush1.msra.mxu0 %v582
  %615 = vmatprep.subr.mxu0 0.0
  %616 = vmatpush1.msra.mxu0 0.0
  %617 = vmatprep.subr.mxu0 0.0
  %618 = vmatpush1.msra.mxu0 0.0
  %619 = vmatprep.subr.mxu0 0.0
  %620 = vmatpush1.msra.mxu0 0.0
  %621 = vmatprep.subr.mxu0 0.0
  %622 = vmatpush1.msra.mxu0 0.0
  %623 = vmatprep.subr.mxu0 0.0
  %624 = vmatpush1.msra.mxu0 0.0
  %625 = vmatprep.subr.mxu0 0.0
  %626 = vmatpush1.msra.mxu0 0.0
  %627 = vmatprep.subr.mxu0 0.0
  %628 = vmatpush1.msra.mxu0 0.0
  %629 = vmatprep.subr.mxu0 0.0
  %630 = vmatpush1.msra.mxu0 0.0
  %631 = vmatprep.subr.mxu0 0.0
  %632 = vmatpush1.msra.mxu0 0.0
  %633 = vmatprep.subr.mxu0 0.0
  %634 = vmatpush1.msra.mxu0 0.0
  %635 = vmatprep.subr.mxu0 0.0
  %636 = vmatpush1.msra.mxu0 0.0
  %637 = vmatprep.subr.mxu0 0.0
  %638 = vmatpush1.msra.mxu0 0.0
  %639 = vmatprep.subr.mxu0 0.0
  %640 = vmatpush1.msra.mxu0 0.0
  %641 = vmatprep.subr.mxu0 0.0
  %642 = vmatpush1.msra.mxu0 0.0
  %643 = vmatprep.subr.mxu0 0.0
  %644 = vmatpush1.msra.mxu0 0.0
  %645 = vmatprep.subr.mxu0 0.0
  %646 = vmatpush1.msra.mxu0 0.0
  %647 = vmatprep.mubr.f32.mxu0 0.0
  %648 = vmatmul.mubr.f32.gmra.mrb[0].mxu0 %v564
  %v649 = vpop.f32.mrb[0].mxu0
  %v650 = vadd.f32 0.0, %v649
  %v651 = vpop.f32.mrb[0].mxu0
  %652 = vdwg.mxu0
  %s653 = scalar_lea.vmem %s0, 48
  %v654 = vld [vmem:[%s653] sm:$0xff]
  %v655 = vadd.f32 %v654, %v650
  %v656 = vtanh.pop %v655
  %s657 = scalar_lea.vmem %s2, 48
  %658 = vst [vmem:[%s657] sm:$0xff] %v656
  %v659 = vld [vmem:[%s1] sm:$0xff]
  %v660 = vld [vmem:[%s1 + $0x8] sm:$0xff]
  %v661 = vld [vmem:[%s1 + $0x10] sm:$0xff]
  %v662 = vld [vmem:[%s1 + $0x18] sm:$0xff]
  %v663 = vld [vmem:[%s1 + $0x20] sm:$0xff]
  %v664 = vld [vmem:[%s1 + $0x28] sm:$0xff]
  %v665 = vld [vmem:[%s1 + $0x30] sm:$0xff]
  %v666 = vld [vmem:[%s1 + $0x38] sm:$0xff]
  %v667 = vld [vmem:[%s1 + $0x40] sm:$0xff]
  %v668 = vld [vmem:[%s1 + $0x48] sm:$0xff]
  %v669 = vld [vmem:[%s1 + $0x50] sm:$0xff]
  %v670 = vld [vmem:[%s1 + $0x58] sm:$0xff]
  %v671 = vld [vmem:[%s1 + $0x60] sm:$0xff]
  %v672 = vld [vmem:[%s1 + $0x68] sm:$0xff]
  %v673 = vld [vmem:[%s1 + $0x70] sm:$0xff]
  %v674 = vld [vmem:[%s1 + $0x78] sm:$0xff]
  %675 = vmatprep.subr.mxu0 0.0
  %676 = vmatpush1.msra.mxu0 %v659
  %677 = vmatprep.subr.mxu0 0.0
  %678 = vmatpush1.msra.mxu0 %v660
  %679 = vmatprep.subr.mxu0 0.0
  %680 = vmatpush1.msra.mxu0 %v661
  %681 = vmatprep.subr.mxu0 0.0
  %682 = vmatpush1.msra.mxu0 %v662
  %683 = vmatprep.subr.mxu0 0.0
  %684 = vmatpush1.msra.mxu0 %v663
  %685 = vmatprep.subr.mxu0 0.0
  %686 = vmatpush1.msra.mxu0 %v664
  %687 = vmatprep.subr.mxu0 0.0
  %688 = vmatpush1.msra.mxu0 %v665
  %689 = vmatprep.subr.mxu0 0.0
  %690 = vmatpush1.msra.mxu0 %v666
  %691 = vmatprep.subr.mxu0 0.0
  %692 = vmatpush1.msra.mxu0 %v667
  %693 = vmatprep.subr.mxu0 0.0
  %694 = vmatpush1.msra.mxu0 %v668
  %695 = vmatprep.subr.mxu0 0.0
  %696 = vmatpush1.msra.mxu0 %v669
  %697 = vmatprep.subr.mxu0 0.0
  %698 = vmatpush1.msra.mxu0 %v670
  %699 = vmatprep.subr.mxu0 0.0
  %700 = vmatpush1.msra.mxu0 %v671
  %701 = vmatprep.subr.mxu0 0.0
  %702 = vmatpush1.msra.mxu0 %v672
  %703 = vmatprep.subr.mxu0 0.0
  %704 = vmatpush1.msra.mxu0 %v673
  %705 = vmatprep.subr.mxu0 0.0
  %706 = vmatpush1.msra.mxu0 %v674
  %707 = vmatprep.subr.mxu0 0.0
  %708 = vmatpush1.msra.mxu0 0.0
  %709 = vmatprep.subr.mxu0 0.0
  %710 = vmatpush1.msra.mxu0 0.0
  %711 = vmatprep.subr.mxu0 0.0
  %712 = vmatpush1.msra.mxu0 0.0
  %713 = vmatprep.subr.mxu0 0.0
  %714 = vmatpush1.msra.mxu0 0.0
  %715 = vmatprep.subr.mxu0 0.0
  %716 = vmatpush1.msra.mxu0 0.0
  %717 = vmatprep.subr.mxu0 0.0
  %718 = vmatpush1.msra.mxu0 0.0
  %719 = vmatprep.subr.mxu0 0.0
  %720 = vmatpush1.msra.mxu0 0.0
  %721 = vmatprep.subr.mxu0 0.0
  %722 = vmatpush1.msra.mxu0 0.0
  %723 = vmatprep.subr.mxu0 0.0
  %724 = vmatpush1.msra.mxu0 0.0
  %725 = vmatprep.subr.mxu0 0.0
  %726 = vmatpush1.msra.mxu0 0.0
  %727 = vmatprep.subr.mxu0 0.0
  %728 = vmatpush1.msra.mxu0 0.0
  %729 = vmatprep.subr.mxu0 0.0
  %730 = vmatpush1.msra.mxu0 0.0
  %731 = vmatprep.subr.mxu0 0.0
  %732 = vmatpush1.msra.mxu0 0.0
  %733 = vmatprep.subr.mxu0 0.0
  %734 = vmatpush1.msra.mxu0 0.0
  %735 = vmatprep.subr.mxu0 0.0
  %736 = vmatpush1.msra.mxu0 0.0
  %737 = vmatprep.subr.mxu0 0.0
  %738 = vmatpush1.msra.mxu0 0.0
  %739 = vmatprep.mubr.f32.mxu0 0.0
  %740 = vmatmul.mubr.f32.gmra.mrb[0].mxu0 %v656
  %v741 = vpop.f32.mrb[0].mxu0
  %v742 = vadd.f32 0.0, %v741
  %v743 = vpop.f32.mrb[0].mxu0
  %744 = vdwg.mxu0
  %s745 = scalar_lea.vmem %s0, 56
  %v746 = vld [vmem:[%s745] sm:$0xff]
  %v747 = vadd.f32 %v746, %v742
  %v748 = vtanh.pop %v747
  %s749 = scalar_lea.vmem %s2, 56
  %750 = vst [vmem:[%s749] sm:$0xff] %v748
  %751 = vst [vmem:[#allocation2] sm:$0xff] %v748
  // Predicated region
  $region14: #{my_rnn_skip_nocat.4} parent=0 // pred_check
    _
  $region15: #{my_rnn_skip_nocat.4} parent=0 // pred_check_branch
    %753 = sbr.rel (0) target = $region17
  $region16: #{my_rnn_skip_nocat.4} parent=0 // pred_region
    _
  $region17: #{my_rnn_skip_nocat.4} parent=0 // pred_fallthru
    _
  // Predicated region
  $region18: #{my_rnn_skip_nocat.4} parent=0 // pred_check
    _
  $region19: #{my_rnn_skip_nocat.4} parent=0 // pred_check_branch
    %755 = sbr.rel (0) target = $region21
  $region20: #{my_rnn_skip_nocat.4} parent=0 // pred_region
    _
  $region21: #{my_rnn_skip_nocat.4} parent=0 // pred_fallthru
    _

</llo_original>
